<compile_context>
chip_gen: v7x
topology: tpu7x:2x2x1
jax: 0.10.0
libtpu: 0.0.40
codegen_flags: <defaults>
</compile_context>

<pallas_src>
import math
import numpy as np
import jax
import jax.numpy as jnp
from jax.experimental import pallas as pl
from jax.experimental.pallas import tpu as pltpu


# ---------------------------------------------------------------------------
# dense operators for adaptive average pooling / bilinear upsampling (host side)
# ---------------------------------------------------------------------------
def _adaptive_pool_matrix(in_size, out_size):
    P = np.zeros((out_size, in_size), np.float32)
    for i in range(out_size):
        start = int(np.floor(i * in_size / out_size))
        end = int(np.ceil((i + 1) * in_size / out_size))
        P[i, start:end] = 1.0 / (end - start)
    return P


def _bilinear_matrix(out_size, in_size):
    # torch nn.functional.upsample_bilinear == interpolate(..., align_corners=True)
    A = np.zeros((out_size, in_size), np.float32)
    if in_size == 1:
        A[:, 0] = 1.0
        return A
    for h in range(out_size):
        s = h * (in_size - 1) / (out_size - 1) if out_size > 1 else 0.0
        i0 = min(int(np.floor(s)), in_size - 2)
        f = s - i0
        A[h, i0] += 1.0 - f
        A[h, i0 + 1] += f
    return A


def _round_up(x, m):
    return (x + m - 1) // m * m


# ---------------------------------------------------------------------------
# fused Pallas kernel: branches + concat-free 3x3 fusion conv, Bt images / step
# ---------------------------------------------------------------------------
def psp_head_forward(x_nchw, qallT, wcatT, zmask, ucatT, wf_x, wf_br, masks,
                     batch_tile=None):
    """x_nchw (N,C,H,W) f32; returns (N, C/4, H, W) f32."""
    N, C, H, W = x_nchw.shape
    HW = H * W
    HWpad = masks.shape[-1]                  # flattened spatial axis, padded to 128-multiple
    C4 = wf_x.shape[0] // 9
    PADL = 128                               # left pad of the partials scratch (>= W+1)
    SCW = PADL + HWpad + 128                 # scratch width: covers all shifted tap windows
    assert W + 1 <= PADL

    Bt = batch_tile or (2 if N % 2 == 0 else 1)
    assert N % Bt == 0

    x_flat = x_nchw.reshape(N, C, HW)        # free reshape; stays f32 (cast happens in VMEM)

    def kernel(x_ref, q_ref, wc_ref, zm_ref, u_ref, wfx_ref, wfbr_ref, m_ref,
               o_ref, parts_ref):
        # Pad lanes of the partials scratch are read by the shifted tap windows but never
        # written below -> keep them zero. Done every step (tiny) so it is megacore-safe.
        parts_ref[:, 0:PADL] = jnp.zeros((9 * C4, PADL), jnp.float32)
        parts_ref[:, PADL + HW:SCW] = jnp.zeros((9 * C4, SCW - PADL - HW), jnp.float32)

        for b in range(Bt):
            x_t = x_ref[b].astype(jnp.bfloat16)                       # (C, HW) bf16

            # ---- batched pyramid branches: 3 MXU matmuls ---------------------
            pooled = jnp.dot(x_t, q_ref[...],                         # (C, NP)
                             preferred_element_type=jnp.float32)
            z = jnp.dot(wc_ref[...], pooled.astype(jnp.bfloat16),     # (4*C4, NP)
                        preferred_element_type=jnp.float32)
            z = jnp.maximum(z, 0.0) * zm_ref[...]                     # per-branch ReLU + block mask
            br = jnp.dot(z.astype(jnp.bfloat16), u_ref[...],          # (4*C4, HW)
                         preferred_element_type=jnp.float32)

            # ---- 3x3 fusion conv, stage 1: all 9 tap partials in one stacked
            #      matmul pair; the big operands stay un-shifted / lane-aligned.
            parts = (jnp.dot(wfx_ref[...], x_t,
                             preferred_element_type=jnp.float32) +
                     jnp.dot(wfbr_ref[...], br.astype(jnp.bfloat16),
                             preferred_element_type=jnp.float32))     # (9*C4, HW) f32
            parts_ref[:, PADL:PADL + HW] = parts

            # ---- stage 2: shifted + masked accumulation of the small partials
            acc = jnp.zeros((C4, HWpad), jnp.float32)
            for t in range(9):
                dh, dw = t // 3 - 1, t % 3 - 1
                off = PADL + dh * W + dw
                acc = acc + parts_ref[t * C4:(t + 1) * C4, off:off + HWpad] * m_ref[t]

            # final BN+ReLU of the fusion bottleneck; lane-dense (HWpad) store
            o_ref[b] = jnp.maximum(acc, 0.0)

    consts = (qallT, wcatT, zmask, ucatT, wf_x, wf_br, masks)

    def full_spec(a):
        return pl.BlockSpec(a.shape, lambda n: (0,) * a.ndim)

    out = pl.pallas_call(
        kernel,
        out_shape=jax.ShapeDtypeStruct((N, C4, HWpad), jnp.float32),
        grid=(N // Bt,),
        in_specs=[pl.BlockSpec((Bt, C, HW), lambda n: (n, 0, 0))]
                 + [full_spec(a) for a in consts],
        out_specs=pl.BlockSpec((Bt, C4, HWpad), lambda n: (n, 0, 0)),
        scratch_shapes=[pltpu.VMEM((9 * C4, SCW), jnp.float32)],
        compiler_params=pltpu.CompilerParams(dimension_semantics=("parallel",)),
    )(x_flat, *consts)

    # strip the lane padding in the wrapper (pad columns are exactly zero)
    return out[:, :, :HW].reshape(N, C4, H, W)


# ---------------------------------------------------------------------------
# host-side constant construction (pooling / upsampling / weight packing)
# ---------------------------------------------------------------------------
def build_constants(H, W, C, C4, w1_t, w2_t, w3_t, w4_t, wf_t, bn_scale):
    HW = H * W
    HWpad = _round_up(HW, 128)
    NP = 1 + 4 + 9 + 36

    # stacked 1x1-conv weights (conv1 has no BN; conv2..4 fold BN scale)
    wcatT = jnp.concatenate(
        [w1_t, bn_scale * w2_t, bn_scale * w3_t, bn_scale * w4_t], axis=0)   # (4*C4, C)

    # fusion 3x3 conv as 9 stacked taps (9*C4, 2C); split into x-half / branch-half
    wf_all = jnp.transpose(wf_t, (2, 3, 0, 1)).reshape(9 * C4, 2 * C) * bn_scale
    wf_x = wf_all[:, :C]                                                     # (9*C4, C)
    wf_br = wf_all[:, C:]                                                    # (9*C4, C)

    # stacked pooling / upsampling operators and the branch block mask
    qallT = np.zeros((HW, NP), np.float32)
    ucatT = np.zeros((NP, HW), np.float32)
    zmask = np.zeros((4 * C4, NP), np.float32)
    qallT[:, 0] = 1.0 / HW            # global average pool (branch 1)
    ucatT[0, :] = 1.0                 # upsample of a 1x1 map == broadcast
    zmask[0:C4, 0] = 1.0
    col = 1
    for b, k in enumerate((2, 3, 6), start=1):
        Q = np.kron(_adaptive_pool_matrix(H, k), _adaptive_pool_matrix(W, k))  # (k*k, HW)
        U = np.kron(_bilinear_matrix(H, k), _bilinear_matrix(W, k))            # (HW, k*k)
        kk = k * k
        qallT[:, col:col + kk] = Q.T
        ucatT[col:col + kk, :] = U.T
        zmask[b * C4:(b + 1) * C4, col:col + kk] = 1.0
        col += kk

    # spatial validity masks for the 9 conv taps (zero padding of the 3x3 conv);
    # padded spatial positions (p >= HW) stay masked to zero.
    masks = np.zeros((9, 1, HWpad), np.float32)
    for t in range(9):
        dh, dw = t // 3 - 1, t % 3 - 1
        for h in range(H):
            for w in range(W):
                if 0 <= h + dh < H and 0 <= w + dw < W:
                    masks[t, 0, h * W + w] = 1.0

    return (jnp.asarray(qallT, jnp.bfloat16),
            wcatT.astype(jnp.bfloat16),
            jnp.asarray(zmask, jnp.float32),
            jnp.asarray(ucatT, jnp.bfloat16),
            wf_x.astype(jnp.bfloat16),
            wf_br.astype(jnp.bfloat16),
            jnp.asarray(masks, jnp.float32))


# ---------------------------------------------------------------------------
# pure-JAX f32 reference (same eval-mode semantics) for correctness checking
# ---------------------------------------------------------------------------
def psp_head_reference(x_nchw, w_mats, wf_hwio):
    N, C, H, W = x_nchw.shape
    x = jnp.transpose(x_nchw, (0, 2, 3, 1))

    def branch(k, wm):
        pooled = x.reshape(N, k, H // k, k, W // k, C).mean(axis=(2, 4))
        z = jnp.maximum(jnp.einsum('nijc,cd->nijd', pooled, wm), 0.0)
        Ah = jnp.asarray(_bilinear_matrix(H, k))
        Aw = jnp.asarray(_bilinear_matrix(W, k))
        return jnp.einsum('hi,nijd,wj->nhwd', Ah, z, Aw)

    bs = [branch(k, wm) for k, wm in zip((1, 2, 3, 6), w_mats)]
    cat = jnp.concatenate([x] + bs, axis=-1)
    y = jax.lax.conv_general_dilated(
        cat, wf_hwio, (1, 1), ((1, 1), (1, 1)),
        dimension_numbers=('NHWC', 'HWIO', 'NHWC'))
    y = jnp.maximum(y, 0.0)
    return jnp.transpose(y, (0, 3, 1, 2))


if __name__ == "__main__":
    N, C, H, W = 2, 8, 12, 12          # in_channels=8, spatial 12x12 (divisible by 1,2,3,6)
    C4 = C // 4
    key = jax.random.PRNGKey(0)
    kx, k1, k2, k3, k4, kf = jax.random.split(key, 6)
    x_nchw = jax.random.normal(kx, (N, C, H, W), jnp.float32)

    # Conv2d weight init: normal(0, sqrt(2 / (kh*kw*out_channels))), no bias.
    std1 = math.sqrt(2.0 / (1 * 1 * C4))
    w1_t = jax.random.normal(k1, (C4, C), jnp.float32) * std1
    w2_t = jax.random.normal(k2, (C4, C), jnp.float32) * std1
    w3_t = jax.random.normal(k3, (C4, C), jnp.float32) * std1
    w4_t = jax.random.normal(k4, (C4, C), jnp.float32) * std1
    stdf = math.sqrt(2.0 / (3 * 3 * C4))
    wf_t = jax.random.normal(kf, (C4, 2 * C, 3, 3), jnp.float32) * stdf

    # Inference-mode BatchNorm2d (gamma=1, beta=0, mean=0, var=1) folded in.
    bn_scale = 1.0 / math.sqrt(1.0 + 1e-5)

    consts = build_constants(H, W, C, C4, w1_t, w2_t, w3_t, w4_t, wf_t, bn_scale)

    out = psp_head_forward(x_nchw, *consts)
    out = jax.block_until_ready(out)

    # f32 reference with the same eval-mode semantics
    w_mats = [w1_t.T, (bn_scale * w2_t).T, (bn_scale * w3_t).T, (bn_scale * w4_t).T]
    wf_hwio = jnp.transpose(wf_t, (2, 3, 1, 0)) * bn_scale
    ref = jax.block_until_ready(psp_head_reference(x_nchw, w_mats, wf_hwio))

    assert out.shape == (N, C4, H, W), out.shape
    assert np.all(np.isfinite(np.asarray(out)))
    # tolerance sized for bf16 MXU operands with f32 accumulation
    assert np.allclose(np.asarray(out), np.asarray(ref), rtol=5e-2, atol=5e-2)
    print("KERNEL_OK")
</pallas_src>

<mosaic_0001>
module attributes {stable_mosaic.version = 11 : i64} {
  func.func @kernel(%arg0: i32, %arg1: memref<2x8x144xf32, #tpu.memory_space<vmem>>, %arg2: memref<144x50xbf16, #tpu.memory_space<vmem>>, %arg3: memref<8x8xbf16, #tpu.memory_space<vmem>>, %arg4: memref<8x50xf32, #tpu.memory_space<vmem>>, %arg5: memref<50x144xbf16, #tpu.memory_space<vmem>>, %arg6: memref<18x8xbf16, #tpu.memory_space<vmem>>, %arg7: memref<18x8xbf16, #tpu.memory_space<vmem>>, %arg8: memref<9x1x256xf32, #tpu.memory_space<vmem>>, %arg9: memref<2x2x256xf32, #tpu.memory_space<vmem>>, %arg10: memref<18x512xf32, #tpu.memory_space<vmem>>) attributes {dimension_semantics = [#tpu.dimension_semantics<parallel>], iteration_bounds = array<i64: 1>, scalar_prefetch = 0 : i64, scratch_operands = 1 : i64, tpu.core_type = #tpu.core_type<tc>, window_params = [{transform_indices = @transform_0, window_bounds = array<i64: 2, 8, 144>}, {pipeline_mode = #tpu.pipeline_mode<synchronous>, transform_indices = @transform_1, window_bounds = array<i64: 144, 50>}, {pipeline_mode = #tpu.pipeline_mode<synchronous>, transform_indices = @transform_2, window_bounds = array<i64: 8, 8>}, {pipeline_mode = #tpu.pipeline_mode<synchronous>, transform_indices = @transform_3, window_bounds = array<i64: 8, 50>}, {pipeline_mode = #tpu.pipeline_mode<synchronous>, transform_indices = @transform_4, window_bounds = array<i64: 50, 144>}, {pipeline_mode = #tpu.pipeline_mode<synchronous>, transform_indices = @transform_5, window_bounds = array<i64: 18, 8>}, {pipeline_mode = #tpu.pipeline_mode<synchronous>, transform_indices = @transform_6, window_bounds = array<i64: 18, 8>}, {pipeline_mode = #tpu.pipeline_mode<synchronous>, transform_indices = @transform_7, window_bounds = array<i64: 9, 1, 256>}, {transform_indices = @transform_8, window_bounds = array<i64: 2, 2, 256>}]} {
    %cst = arith.constant 0.000000e+00 : f32
    %0 = vector.broadcast %cst : f32 to vector<18x128xf32>
    %c0 = arith.constant 0 : index
    %c0_0 = arith.constant 0 : index
    %1 = vector.load %arg10[%c0, %c0_0] : memref<18x512xf32, #tpu.memory_space<vmem>>, vector<18x128xf32>
    tpu.vector_store %arg10[%c0, %c0_0], %0 {strides = array<i32>} : memref<18x512xf32, #tpu.memory_space<vmem>>, vector<18x128xf32>,
    %cst_1 = arith.constant 0.000000e+00 : f32
    %2 = vector.broadcast %cst_1 : f32 to vector<18x240xf32>
    %c0_2 = arith.constant 0 : index
    %c272 = arith.constant 272 : index
    %3 = vector.load %arg10[%c0_2, %c272] : memref<18x512xf32, #tpu.memory_space<vmem>>, vector<18x240xf32>
    tpu.vector_store %arg10[%c0_2, %c272], %2 {strides = array<i32>} : memref<18x512xf32, #tpu.memory_space<vmem>>, vector<18x240xf32>,
    %c0_3 = arith.constant 0 : index
    %c0_4 = arith.constant 0 : index
    %c0_5 = arith.constant 0 : index
    %4 = vector.load %arg1[%c0_3, %c0_4, %c0_5] : memref<2x8x144xf32, #tpu.memory_space<vmem>>, vector<1x8x144xf32>
    %5 = vector.shape_cast %4 : vector<1x8x144xf32> to vector<8x144xf32>
    %6 = arith.truncf %5 : vector<8x144xf32> to vector<8x144xbf16>
    %c0_6 = arith.constant 0 : index
    %c0_7 = arith.constant 0 : index
    %7 = vector.load %arg2[%c0_6, %c0_7] : memref<144x50xbf16, #tpu.memory_space<vmem>>, vector<144x50xbf16>
    %cst_8 = arith.constant dense<0.000000e+00> : vector<8x50xf32>
    %8 = tpu.matmul %6, %7, %cst_8 {dimension_numbers = #tpu.dot_dimension_numbers<[1], [0], [0], [1], [0, 0, 1, 1], [], []>} : vector<8x144xbf16>, vector<144x50xbf16>, vector<8x50xf32> -> vector<8x50xf32>
    %c0_9 = arith.constant 0 : index
    %c0_10 = arith.constant 0 : index
    %9 = vector.load %arg3[%c0_9, %c0_10] : memref<8x8xbf16, #tpu.memory_space<vmem>>, vector<8x8xbf16>
    %10 = arith.truncf %8 : vector<8x50xf32> to vector<8x50xbf16>
    %cst_11 = arith.constant dense<0.000000e+00> : vector<8x50xf32>
    %11 = tpu.matmul %9, %10, %cst_11 {dimension_numbers = #tpu.dot_dimension_numbers<[1], [0], [0], [1], [0, 0, 1, 1], [], []>} : vector<8x8xbf16>, vector<8x50xbf16>, vector<8x50xf32> -> vector<8x50xf32>
    %cst_12 = arith.constant 0.000000e+00 : f32
    %12 = vector.broadcast %cst_12 : f32 to vector<8x50xf32>
    %13 = arith.maximumf %11, %12 : vector<8x50xf32>
    %c0_13 = arith.constant 0 : index
    %c0_14 = arith.constant 0 : index
    %14 = vector.load %arg4[%c0_13, %c0_14] : memref<8x50xf32, #tpu.memory_space<vmem>>, vector<8x50xf32>
    %15 = arith.mulf %13, %14 : vector<8x50xf32>
    %16 = arith.truncf %15 : vector<8x50xf32> to vector<8x50xbf16>
    %c0_15 = arith.constant 0 : index
    %c0_16 = arith.constant 0 : index
    %17 = vector.load %arg5[%c0_15, %c0_16] : memref<50x144xbf16, #tpu.memory_space<vmem>>, vector<50x144xbf16>
    %cst_17 = arith.constant dense<0.000000e+00> : vector<8x144xf32>
    %18 = tpu.matmul %16, %17, %cst_17 {dimension_numbers = #tpu.dot_dimension_numbers<[1], [0], [0], [1], [0, 0, 1, 1], [], []>} : vector<8x50xbf16>, vector<50x144xbf16>, vector<8x144xf32> -> vector<8x144xf32>
    %c0_18 = arith.constant 0 : index
    %c0_19 = arith.constant 0 : index
    %19 = vector.load %arg6[%c0_18, %c0_19] : memref<18x8xbf16, #tpu.memory_space<vmem>>, vector<18x8xbf16>
    %cst_20 = arith.constant dense<0.000000e+00> : vector<18x144xf32>
    %20 = tpu.matmul %19, %6, %cst_20 {dimension_numbers = #tpu.dot_dimension_numbers<[1], [0], [0], [1], [0, 0, 1, 1], [], []>} : vector<18x8xbf16>, vector<8x144xbf16>, vector<18x144xf32> -> vector<18x144xf32>
    %c0_21 = arith.constant 0 : index
    %c0_22 = arith.constant 0 : index
    %21 = vector.load %arg7[%c0_21, %c0_22] : memref<18x8xbf16, #tpu.memory_space<vmem>>, vector<18x8xbf16>
    %22 = arith.truncf %18 : vector<8x144xf32> to vector<8x144xbf16>
    %cst_23 = arith.constant dense<0.000000e+00> : vector<18x144xf32>
    %23 = tpu.matmul %21, %22, %cst_23 {dimension_numbers = #tpu.dot_dimension_numbers<[1], [0], [0], [1], [0, 0, 1, 1], [], []>} : vector<18x8xbf16>, vector<8x144xbf16>, vector<18x144xf32> -> vector<18x144xf32>
    %24 = arith.addf %20, %23 : vector<18x144xf32>
    %c0_24 = arith.constant 0 : index
    %c128 = arith.constant 128 : index
    %25 = vector.load %arg10[%c0_24, %c128] : memref<18x512xf32, #tpu.memory_space<vmem>>, vector<18x144xf32>
    tpu.vector_store %arg10[%c0_24, %c128], %24 {strides = array<i32>} : memref<18x512xf32, #tpu.memory_space<vmem>>, vector<18x144xf32>,
    %cst_25 = arith.constant 0.000000e+00 : f32
    %26 = vector.broadcast %cst_25 : f32 to vector<2x256xf32>
    %c0_26 = arith.constant 0 : index
    %c115 = arith.constant 115 : index
    %27 = vector.load %arg10[%c0_26, %c115] : memref<18x512xf32, #tpu.memory_space<vmem>>, vector<2x256xf32>
    %c0_27 = arith.constant 0 : index
    %c0_28 = arith.constant 0 : index
    %c0_29 = arith.constant 0 : index
    %28 = vector.load %arg8[%c0_27, %c0_28, %c0_29] : memref<9x1x256xf32, #tpu.memory_space<vmem>>, vector<1x1x256xf32>
    %29 = vector.shape_cast %28 : vector<1x1x256xf32> to vector<1x256xf32>
    %30 = vector.broadcast %29 : vector<1x256xf32> to vector<2x256xf32>
    %31 = arith.mulf %27, %30 : vector<2x256xf32>
    %32 = arith.addf %26, %31 : vector<2x256xf32>
    %c2 = arith.constant 2 : index
    %c116 = arith.constant 116 : index
    %33 = vector.load %arg10[%c2, %c116] : memref<18x512xf32, #tpu.memory_space<vmem>>, vector<2x256xf32>
    %c1 = arith.constant 1 : index
    %c0_30 = arith.constant 0 : index
    %c0_31 = arith.constant 0 : index
    %34 = vector.load %arg8[%c1, %c0_30, %c0_31] : memref<9x1x256xf32, #tpu.memory_space<vmem>>, vector<1x1x256xf32>
    %35 = vector.shape_cast %34 : vector<1x1x256xf32> to vector<1x256xf32>
    %36 = vector.broadcast %35 : vector<1x256xf32> to vector<2x256xf32>
    %37 = arith.mulf %33, %36 : vector<2x256xf32>
    %38 = arith.addf %32, %37 : vector<2x256xf32>
    %c4 = arith.constant 4 : index
    %c117 = arith.constant 117 : index
    %39 = vector.load %arg10[%c4, %c117] : memref<18x512xf32, #tpu.memory_space<vmem>>, vector<2x256xf32>
    %c2_32 = arith.constant 2 : index
    %c0_33 = arith.constant 0 : index
    %c0_34 = arith.constant 0 : index
    %40 = vector.load %arg8[%c2_32, %c0_33, %c0_34] : memref<9x1x256xf32, #tpu.memory_space<vmem>>, vector<1x1x256xf32>
    %41 = vector.shape_cast %40 : vector<1x1x256xf32> to vector<1x256xf32>
    %42 = vector.broadcast %41 : vector<1x256xf32> to vector<2x256xf32>
    %43 = arith.mulf %39, %42 : vector<2x256xf32>
    %44 = arith.addf %38, %43 : vector<2x256xf32>
    %c6 = arith.constant 6 : index
    %c127 = arith.constant 127 : index
    %45 = vector.load %arg10[%c6, %c127] : memref<18x512xf32, #tpu.memory_space<vmem>>, vector<2x256xf32>
    %c3 = arith.constant 3 : index
    %c0_35 = arith.constant 0 : index
    %c0_36 = arith.constant 0 : index
    %46 = vector.load %arg8[%c3, %c0_35, %c0_36] : memref<9x1x256xf32, #tpu.memory_space<vmem>>, vector<1x1x256xf32>
    %47 = vector.shape_cast %46 : vector<1x1x256xf32> to vector<1x256xf32>
    %48 = vector.broadcast %47 : vector<1x256xf32> to vector<2x256xf32>
    %49 = arith.mulf %45, %48 : vector<2x256xf32>
    %50 = arith.addf %44, %49 : vector<2x256xf32>
    %c8 = arith.constant 8 : index
    %c128_37 = arith.constant 128 : index
    %51 = vector.load %arg10[%c8, %c128_37] : memref<18x512xf32, #tpu.memory_space<vmem>>, vector<2x256xf32>
    %c4_38 = arith.constant 4 : index
    %c0_39 = arith.constant 0 : index
    %c0_40 = arith.constant 0 : index
    %52 = vector.load %arg8[%c4_38, %c0_39, %c0_40] : memref<9x1x256xf32, #tpu.memory_space<vmem>>, vector<1x1x256xf32>
    %53 = vector.shape_cast %52 : vector<1x1x256xf32> to vector<1x256xf32>
    %54 = vector.broadcast %53 : vector<1x256xf32> to vector<2x256xf32>
    %55 = arith.mulf %51, %54 : vector<2x256xf32>
    %56 = arith.addf %50, %55 : vector<2x256xf32>
    %c10 = arith.constant 10 : index
    %c129 = arith.constant 129 : index
    %57 = vector.load %arg10[%c10, %c129] : memref<18x512xf32, #tpu.memory_space<vmem>>, vector<2x256xf32>
    %c5 = arith.constant 5 : index
    %c0_41 = arith.constant 0 : index
    %c0_42 = arith.constant 0 : index
    %58 = vector.load %arg8[%c5, %c0_41, %c0_42] : memref<9x1x256xf32, #tpu.memory_space<vmem>>, vector<1x1x256xf32>
    %59 = vector.shape_cast %58 : vector<1x1x256xf32> to vector<1x256xf32>
    %60 = vector.broadcast %59 : vector<1x256xf32> to vector<2x256xf32>
    %61 = arith.mulf %57, %60 : vector<2x256xf32>
    %62 = arith.addf %56, %61 : vector<2x256xf32>
    %c12 = arith.constant 12 : index
    %c139 = arith.constant 139 : index
    %63 = vector.load %arg10[%c12, %c139] : memref<18x512xf32, #tpu.memory_space<vmem>>, vector<2x256xf32>
    %c6_43 = arith.constant 6 : index
    %c0_44 = arith.constant 0 : index
    %c0_45 = arith.constant 0 : index
    %64 = vector.load %arg8[%c6_43, %c0_44, %c0_45] : memref<9x1x256xf32, #tpu.memory_space<vmem>>, vector<1x1x256xf32>
    %65 = vector.shape_cast %64 : vector<1x1x256xf32> to vector<1x256xf32>
    %66 = vector.broadcast %65 : vector<1x256xf32> to vector<2x256xf32>
    %67 = arith.mulf %63, %66 : vector<2x256xf32>
    %68 = arith.addf %62, %67 : vector<2x256xf32>
    %c14 = arith.constant 14 : index
    %c140 = arith.constant 140 : index
    %69 = vector.load %arg10[%c14, %c140] : memref<18x512xf32, #tpu.memory_space<vmem>>, vector<2x256xf32>
    %c7 = arith.constant 7 : index
    %c0_46 = arith.constant 0 : index
    %c0_47 = arith.constant 0 : index
    %70 = vector.load %arg8[%c7, %c0_46, %c0_47] : memref<9x1x256xf32, #tpu.memory_space<vmem>>, vector<1x1x256xf32>
    %71 = vector.shape_cast %70 : vector<1x1x256xf32> to vector<1x256xf32>
    %72 = vector.broadcast %71 : vector<1x256xf32> to vector<2x256xf32>
    %73 = arith.mulf %69, %72 : vector<2x256xf32>
    %74 = arith.addf %68, %73 : vector<2x256xf32>
    %c16 = arith.constant 16 : index
    %c141 = arith.constant 141 : index
    %75 = vector.load %arg10[%c16, %c141] : memref<18x512xf32, #tpu.memory_space<vmem>>, vector<2x256xf32>
    %c8_48 = arith.constant 8 : index
    %c0_49 = arith.constant 0 : index
    %c0_50 = arith.constant 0 : index
    %76 = vector.load %arg8[%c8_48, %c0_49, %c0_50] : memref<9x1x256xf32, #tpu.memory_space<vmem>>, vector<1x1x256xf32>
    %77 = vector.shape_cast %76 : vector<1x1x256xf32> to vector<1x256xf32>
    %78 = vector.broadcast %77 : vector<1x256xf32> to vector<2x256xf32>
    %79 = arith.mulf %75, %78 : vector<2x256xf32>
    %80 = arith.addf %74, %79 : vector<2x256xf32>
    %cst_51 = arith.constant 0.000000e+00 : f32
    %81 = vector.broadcast %cst_51 : f32 to vector<2x256xf32>
    %82 = arith.maximumf %80, %81 : vector<2x256xf32>
    %c0_52 = arith.constant 0 : index
    %c0_53 = arith.constant 0 : index
    %c0_54 = arith.constant 0 : index
    %83 = vector.load %arg9[%c0_52, %c0_53, %c0_54] : memref<2x2x256xf32, #tpu.memory_space<vmem>>, vector<1x2x256xf32>
    %84 = vector.shape_cast %83 : vector<1x2x256xf32> to vector<2x256xf32>
    %85 = vector.shape_cast %82 : vector<2x256xf32> to vector<1x2x256xf32>
    tpu.vector_store %arg9[%c0_52, %c0_53, %c0_54], %85 {strides = array<i32>} : memref<2x2x256xf32, #tpu.memory_space<vmem>>, vector<1x2x256xf32>,
    %c1_55 = arith.constant 1 : index
    %c0_56 = arith.constant 0 : index
    %c0_57 = arith.constant 0 : index
    %86 = vector.load %arg1[%c1_55, %c0_56, %c0_57] : memref<2x8x144xf32, #tpu.memory_space<vmem>>, vector<1x8x144xf32>
    %87 = vector.shape_cast %86 : vector<1x8x144xf32> to vector<8x144xf32>
    %88 = arith.truncf %87 : vector<8x144xf32> to vector<8x144xbf16>
    %c0_58 = arith.constant 0 : index
    %c0_59 = arith.constant 0 : index
    %89 = vector.load %arg2[%c0_58, %c0_59] : memref<144x50xbf16, #tpu.memory_space<vmem>>, vector<144x50xbf16>
    %cst_60 = arith.constant dense<0.000000e+00> : vector<8x50xf32>
    %90 = tpu.matmul %88, %89, %cst_60 {dimension_numbers = #tpu.dot_dimension_numbers<[1], [0], [0], [1], [0, 0, 1, 1], [], []>} : vector<8x144xbf16>, vector<144x50xbf16>, vector<8x50xf32> -> vector<8x50xf32>
    %c0_61 = arith.constant 0 : index
    %c0_62 = arith.constant 0 : index
    %91 = vector.load %arg3[%c0_61, %c0_62] : memref<8x8xbf16, #tpu.memory_space<vmem>>, vector<8x8xbf16>
    %92 = arith.truncf %90 : vector<8x50xf32> to vector<8x50xbf16>
    %cst_63 = arith.constant dense<0.000000e+00> : vector<8x50xf32>
    %93 = tpu.matmul %91, %92, %cst_63 {dimension_numbers = #tpu.dot_dimension_numbers<[1], [0], [0], [1], [0, 0, 1, 1], [], []>} : vector<8x8xbf16>, vector<8x50xbf16>, vector<8x50xf32> -> vector<8x50xf32>
    %cst_64 = arith.constant 0.000000e+00 : f32
    %94 = vector.broadcast %cst_64 : f32 to vector<8x50xf32>
    %95 = arith.maximumf %93, %94 : vector<8x50xf32>
    %c0_65 = arith.constant 0 : index
    %c0_66 = arith.constant 0 : index
    %96 = vector.load %arg4[%c0_65, %c0_66] : memref<8x50xf32, #tpu.memory_space<vmem>>, vector<8x50xf32>
    %97 = arith.mulf %95, %96 : vector<8x50xf32>
    %98 = arith.truncf %97 : vector<8x50xf32> to vector<8x50xbf16>
    %c0_67 = arith.constant 0 : index
    %c0_68 = arith.constant 0 : index
    %99 = vector.load %arg5[%c0_67, %c0_68] : memref<50x144xbf16, #tpu.memory_space<vmem>>, vector<50x144xbf16>
    %cst_69 = arith.constant dense<0.000000e+00> : vector<8x144xf32>
    %100 = tpu.matmul %98, %99, %cst_69 {dimension_numbers = #tpu.dot_dimension_numbers<[1], [0], [0], [1], [0, 0, 1, 1], [], []>} : vector<8x50xbf16>, vector<50x144xbf16>, vector<8x144xf32> -> vector<8x144xf32>
    %c0_70 = arith.constant 0 : index
    %c0_71 = arith.constant 0 : index
    %101 = vector.load %arg6[%c0_70, %c0_71] : memref<18x8xbf16, #tpu.memory_space<vmem>>, vector<18x8xbf16>
    %cst_72 = arith.constant dense<0.000000e+00> : vector<18x144xf32>
    %102 = tpu.matmul %101, %88, %cst_72 {dimension_numbers = #tpu.dot_dimension_numbers<[1], [0], [0], [1], [0, 0, 1, 1], [], []>} : vector<18x8xbf16>, vector<8x144xbf16>, vector<18x144xf32> -> vector<18x144xf32>
    %c0_73 = arith.constant 0 : index
    %c0_74 = arith.constant 0 : index
    %103 = vector.load %arg7[%c0_73, %c0_74] : memref<18x8xbf16, #tpu.memory_space<vmem>>, vector<18x8xbf16>
    %104 = arith.truncf %100 : vector<8x144xf32> to vector<8x144xbf16>
    %cst_75 = arith.constant dense<0.000000e+00> : vector<18x144xf32>
    %105 = tpu.matmul %103, %104, %cst_75 {dimension_numbers = #tpu.dot_dimension_numbers<[1], [0], [0], [1], [0, 0, 1, 1], [], []>} : vector<18x8xbf16>, vector<8x144xbf16>, vector<18x144xf32> -> vector<18x144xf32>
    %106 = arith.addf %102, %105 : vector<18x144xf32>
    %c0_76 = arith.constant 0 : index
    %c128_77 = arith.constant 128 : index
    %107 = vector.load %arg10[%c0_76, %c128_77] : memref<18x512xf32, #tpu.memory_space<vmem>>, vector<18x144xf32>
    tpu.vector_store %arg10[%c0_76, %c128_77], %106 {strides = array<i32>} : memref<18x512xf32, #tpu.memory_space<vmem>>, vector<18x144xf32>,
    %cst_78 = arith.constant 0.000000e+00 : f32
    %108 = vector.broadcast %cst_78 : f32 to vector<2x256xf32>
    %c0_79 = arith.constant 0 : index
    %c115_80 = arith.constant 115 : index
    %109 = vector.load %arg10[%c0_79, %c115_80] : memref<18x512xf32, #tpu.memory_space<vmem>>, vector<2x256xf32>
    %c0_81 = arith.constant 0 : index
    %c0_82 = arith.constant 0 : index
    %c0_83 = arith.constant 0 : index
    %110 = vector.load %arg8[%c0_81, %c0_82, %c0_83] : memref<9x1x256xf32, #tpu.memory_space<vmem>>, vector<1x1x256xf32>
    %111 = vector.shape_cast %110 : vector<1x1x256xf32> to vector<1x256xf32>
    %112 = vector.broadcast %111 : vector<1x256xf32> to vector<2x256xf32>
    %113 = arith.mulf %109, %112 : vector<2x256xf32>
    %114 = arith.addf %108, %113 : vector<2x256xf32>
    %c2_84 = arith.constant 2 : index
    %c116_85 = arith.constant 116 : index
    %115 = vector.load %arg10[%c2_84, %c116_85] : memref<18x512xf32, #tpu.memory_space<vmem>>, vector<2x256xf32>
    %c1_86 = arith.constant 1 : index
    %c0_87 = arith.constant 0 : index
    %c0_88 = arith.constant 0 : index
    %116 = vector.load %arg8[%c1_86, %c0_87, %c0_88] : memref<9x1x256xf32, #tpu.memory_space<vmem>>, vector<1x1x256xf32>
    %117 = vector.shape_cast %116 : vector<1x1x256xf32> to vector<1x256xf32>
    %118 = vector.broadcast %117 : vector<1x256xf32> to vector<2x256xf32>
    %119 = arith.mulf %115, %118 : vector<2x256xf32>
    %120 = arith.addf %114, %119 : vector<2x256xf32>
    %c4_89 = arith.constant 4 : index
    %c117_90 = arith.constant 117 : index
    %121 = vector.load %arg10[%c4_89, %c117_90] : memref<18x512xf32, #tpu.memory_space<vmem>>, vector<2x256xf32>
    %c2_91 = arith.constant 2 : index
    %c0_92 = arith.constant 0 : index
    %c0_93 = arith.constant 0 : index
    %122 = vector.load %arg8[%c2_91, %c0_92, %c0_93] : memref<9x1x256xf32, #tpu.memory_space<vmem>>, vector<1x1x256xf32>
    %123 = vector.shape_cast %122 : vector<1x1x256xf32> to vector<1x256xf32>
    %124 = vector.broadcast %123 : vector<1x256xf32> to vector<2x256xf32>
    %125 = arith.mulf %121, %124 : vector<2x256xf32>
    %126 = arith.addf %120, %125 : vector<2x256xf32>
    %c6_94 = arith.constant 6 : index
    %c127_95 = arith.constant 127 : index
    %127 = vector.load %arg10[%c6_94, %c127_95] : memref<18x512xf32, #tpu.memory_space<vmem>>, vector<2x256xf32>
    %c3_96 = arith.constant 3 : index
    %c0_97 = arith.constant 0 : index
    %c0_98 = arith.constant 0 : index
    %128 = vector.load %arg8[%c3_96, %c0_97, %c0_98] : memref<9x1x256xf32, #tpu.memory_space<vmem>>, vector<1x1x256xf32>
    %129 = vector.shape_cast %128 : vector<1x1x256xf32> to vector<1x256xf32>
    %130 = vector.broadcast %129 : vector<1x256xf32> to vector<2x256xf32>
    %131 = arith.mulf %127, %130 : vector<2x256xf32>
    %132 = arith.addf %126, %131 : vector<2x256xf32>
    %c8_99 = arith.constant 8 : index
    %c128_100 = arith.constant 128 : index
    %133 = vector.load %arg10[%c8_99, %c128_100] : memref<18x512xf32, #tpu.memory_space<vmem>>, vector<2x256xf32>
    %c4_101 = arith.constant 4 : index
    %c0_102 = arith.constant 0 : index
    %c0_103 = arith.constant 0 : index
    %134 = vector.load %arg8[%c4_101, %c0_102, %c0_103] : memref<9x1x256xf32, #tpu.memory_space<vmem>>, vector<1x1x256xf32>
    %135 = vector.shape_cast %134 : vector<1x1x256xf32> to vector<1x256xf32>
    %136 = vector.broadcast %135 : vector<1x256xf32> to vector<2x256xf32>
    %137 = arith.mulf %133, %136 : vector<2x256xf32>
    %138 = arith.addf %132, %137 : vector<2x256xf32>
    %c10_104 = arith.constant 10 : index
    %c129_105 = arith.constant 129 : index
    %139 = vector.load %arg10[%c10_104, %c129_105] : memref<18x512xf32, #tpu.memory_space<vmem>>, vector<2x256xf32>
    %c5_106 = arith.constant 5 : index
    %c0_107 = arith.constant 0 : index
    %c0_108 = arith.constant 0 : index
    %140 = vector.load %arg8[%c5_106, %c0_107, %c0_108] : memref<9x1x256xf32, #tpu.memory_space<vmem>>, vector<1x1x256xf32>
    %141 = vector.shape_cast %140 : vector<1x1x256xf32> to vector<1x256xf32>
    %142 = vector.broadcast %141 : vector<1x256xf32> to vector<2x256xf32>
    %143 = arith.mulf %139, %142 : vector<2x256xf32>
    %144 = arith.addf %138, %143 : vector<2x256xf32>
    %c12_109 = arith.constant 12 : index
    %c139_110 = arith.constant 139 : index
    %145 = vector.load %arg10[%c12_109, %c139_110] : memref<18x512xf32, #tpu.memory_space<vmem>>, vector<2x256xf32>
    %c6_111 = arith.constant 6 : index
    %c0_112 = arith.constant 0 : index
    %c0_113 = arith.constant 0 : index
    %146 = vector.load %arg8[%c6_111, %c0_112, %c0_113] : memref<9x1x256xf32, #tpu.memory_space<vmem>>, vector<1x1x256xf32>
    %147 = vector.shape_cast %146 : vector<1x1x256xf32> to vector<1x256xf32>
    %148 = vector.broadcast %147 : vector<1x256xf32> to vector<2x256xf32>
    %149 = arith.mulf %145, %148 : vector<2x256xf32>
    %150 = arith.addf %144, %149 : vector<2x256xf32>
    %c14_114 = arith.constant 14 : index
    %c140_115 = arith.constant 140 : index
    %151 = vector.load %arg10[%c14_114, %c140_115] : memref<18x512xf32, #tpu.memory_space<vmem>>, vector<2x256xf32>
    %c7_116 = arith.constant 7 : index
    %c0_117 = arith.constant 0 : index
    %c0_118 = arith.constant 0 : index
    %152 = vector.load %arg8[%c7_116, %c0_117, %c0_118] : memref<9x1x256xf32, #tpu.memory_space<vmem>>, vector<1x1x256xf32>
    %153 = vector.shape_cast %152 : vector<1x1x256xf32> to vector<1x256xf32>
    %154 = vector.broadcast %153 : vector<1x256xf32> to vector<2x256xf32>
    %155 = arith.mulf %151, %154 : vector<2x256xf32>
    %156 = arith.addf %150, %155 : vector<2x256xf32>
    %c16_119 = arith.constant 16 : index
    %c141_120 = arith.constant 141 : index
    %157 = vector.load %arg10[%c16_119, %c141_120] : memref<18x512xf32, #tpu.memory_space<vmem>>, vector<2x256xf32>
    %c8_121 = arith.constant 8 : index
    %c0_122 = arith.constant 0 : index
    %c0_123 = arith.constant 0 : index
    %158 = vector.load %arg8[%c8_121, %c0_122, %c0_123] : memref<9x1x256xf32, #tpu.memory_space<vmem>>, vector<1x1x256xf32>
    %159 = vector.shape_cast %158 : vector<1x1x256xf32> to vector<1x256xf32>
    %160 = vector.broadcast %159 : vector<1x256xf32> to vector<2x256xf32>
    %161 = arith.mulf %157, %160 : vector<2x256xf32>
    %162 = arith.addf %156, %161 : vector<2x256xf32>
    %cst_124 = arith.constant 0.000000e+00 : f32
    %163 = vector.broadcast %cst_124 : f32 to vector<2x256xf32>
    %164 = arith.maximumf %162, %163 : vector<2x256xf32>
    %c1_125 = arith.constant 1 : index
    %c0_126 = arith.constant 0 : index
    %c0_127 = arith.constant 0 : index
    %165 = vector.load %arg9[%c1_125, %c0_126, %c0_127] : memref<2x2x256xf32, #tpu.memory_space<vmem>>, vector<1x2x256xf32>
    %166 = vector.shape_cast %165 : vector<1x2x256xf32> to vector<2x256xf32>
    %167 = vector.shape_cast %164 : vector<2x256xf32> to vector<1x2x256xf32>
    tpu.vector_store %arg9[%c1_125, %c0_126, %c0_127], %167 {strides = array<i32>} : memref<2x2x256xf32, #tpu.memory_space<vmem>>, vector<1x2x256xf32>,
    return
  }
  func.func @transform_0(%arg0: i32) -> (i32, i32, i32) {
    %c0_i32 = arith.constant 0 : i32
    %c0_i32_0 = arith.constant 0 : i32
    %c0_i32_1 = arith.constant 0 : i32
    return %arg0, %c0_i32, %c0_i32_0 : i32, i32, i32
  }
  func.func @transform_1(%arg0: i32) -> (i32, i32) {
    %c0_i32 = arith.constant 0 : i32
    %c0_i32_0 = arith.constant 0 : i32
    %c0_i32_1 = arith.constant 0 : i32
    return %c0_i32, %c0_i32_0 : i32, i32
  }
  func.func @transform_2(%arg0: i32) -> (i32, i32) {
    %c0_i32 = arith.constant 0 : i32
    %c0_i32_0 = arith.constant 0 : i32
    %c0_i32_1 = arith.constant 0 : i32
    return %c0_i32, %c0_i32_0 : i32, i32
  }
  func.func @transform_3(%arg0: i32) -> (i32, i32) {
    %c0_i32 = arith.constant 0 : i32
    %c0_i32_0 = arith.constant 0 : i32
    %c0_i32_1 = arith.constant 0 : i32
    return %c0_i32, %c0_i32_0 : i32, i32
  }
  func.func @transform_4(%arg0: i32) -> (i32, i32) {
    %c0_i32 = arith.constant 0 : i32
    %c0_i32_0 = arith.constant 0 : i32
    %c0_i32_1 = arith.constant 0 : i32
    return %c0_i32, %c0_i32_0 : i32, i32
  }
  func.func @transform_5(%arg0: i32) -> (i32, i32) {
    %c0_i32 = arith.constant 0 : i32
    %c0_i32_0 = arith.constant 0 : i32
    %c0_i32_1 = arith.constant 0 : i32
    return %c0_i32, %c0_i32_0 : i32, i32
  }
  func.func @transform_6(%arg0: i32) -> (i32, i32) {
    %c0_i32 = arith.constant 0 : i32
    %c0_i32_0 = arith.constant 0 : i32
    %c0_i32_1 = arith.constant 0 : i32
    return %c0_i32, %c0_i32_0 : i32, i32
  }
  func.func @transform_7(%arg0: i32) -> (i32, i32, i32) {
    %c0_i32 = arith.constant 0 : i32
    %c0_i32_0 = arith.constant 0 : i32
    %c0_i32_1 = arith.constant 0 : i32
    %c0_i32_2 = arith.constant 0 : i32
    return %c0_i32, %c0_i32_0, %c0_i32_1 : i32, i32, i32
  }
  func.func @transform_8(%arg0: i32) -> (i32, i32, i32) {
    %c0_i32 = arith.constant 0 : i32
    %c0_i32_0 = arith.constant 0 : i32
    %c0_i32_1 = arith.constant 0 : i32
    return %arg0, %c0_i32, %c0_i32_0 : i32, i32, i32
  }
}

</mosaic_0001>

<llo_original>
// kernel: tpu_custom_call.1
$region0: #{tpu_custom_call.1}
  #allocation0 [shape = 'u32[]', space=smem, size = 0x4, offset = 0x4, fixed_abs, tag = 'smem constant byte address 0x4 - core index']
  #allocation1 [shape = 'u32[144,128]{1,0:T(1,128)}', space=vmem, size = 0x12000, scoped, tag = 'internal scratch']
  #allocation2 [shape = 'f32[18,512]{1,0:T(8,128)}', space=vmem, size = 0xc000, scoped, tag = 'scratch operand']
  %s0 = inlined_call_operand.vmem [shape: f32[2,8,144], index: 0, kind: input, shape index: {}]
  %s1 = inlined_call_operand.vmem [shape: bf16[144,50], index: 1, kind: input, shape index: {}]
  %s2 = inlined_call_operand.vmem [shape: bf16[8,8], index: 2, kind: input, shape index: {}]
  %s3 = inlined_call_operand.vmem [shape: f32[8,50], index: 3, kind: input, shape index: {}]
  %s4 = inlined_call_operand.vmem [shape: bf16[50,144], index: 4, kind: input, shape index: {}]
  %s5 = inlined_call_operand.vmem [shape: bf16[18,8], index: 5, kind: input, shape index: {}]
  %s6 = inlined_call_operand.vmem [shape: bf16[18,8], index: 6, kind: input, shape index: {}]
  %s7 = inlined_call_operand.vmem [shape: f32[9,1,256], index: 7, kind: input, shape index: {}]
  %s8 = inlined_call_operand.hbm [shape: f32[2,2,256], index: 8, kind: output, shape index: {}]
  %s9 = sld [smem:[#allocation0]]
  $region42: #{tpu_custom_call.1} parent=0
    _
  %s11 = ssub.s32 1, %s9
  %s12 = scalar_select 0, %s11, %s9
  $region1: #{tpu_custom_call.1} parent=0
    #allocation3 [shape = 'u8[4096]{0}', space=vmem, size = 0x1000, scoped, tag = 'output window, operand 0, single buffered']
    #allocation4 [shape = 's32[1]{0}', space=sflag, size = 0x4, scoped, tag = 'scoped memory for tpu_custom_call.1']
    %13 = vsyncpa [#allocation4], 0
    // Predicated region
    $region2: #{tpu_custom_call.1} parent=1 // pred_check
      _
    $region3: #{tpu_custom_call.1} parent=1 // pred_check_branch
      %15 = sbr.rel (0) target = $region5
    $region4: #{tpu_custom_call.1} parent=1 // pred_region
      _
    $region5: #{tpu_custom_call.1} parent=1 // pred_fallthru
      _
    // Predicated region
    $region6: #{tpu_custom_call.1} parent=1 // pred_check
      _
    $region7: #{tpu_custom_call.1} parent=1 // pred_check_branch
      %17 = sbr.rel (0) target = $region9
    $region8: #{tpu_custom_call.1} parent=1 // pred_region
      _
    $region9: #{tpu_custom_call.1} parent=1 // pred_fallthru
      _
    // Predicated region
    $region10: #{tpu_custom_call.1} parent=1 // pred_check
      _
    $region11: #{tpu_custom_call.1} parent=1 // pred_check_branch
      %19 = sbr.rel (0) target = $region13
    $region12: #{tpu_custom_call.1} parent=1 // pred_region
      _
    $region13: #{tpu_custom_call.1} parent=1 // pred_fallthru
      _
    // Predicated region
    $region14: #{tpu_custom_call.1} parent=1 // pred_check
      _
    $region15: #{tpu_custom_call.1} parent=1 // pred_check_branch
      %21 = sbr.rel (0) target = $region17
    $region16: #{tpu_custom_call.1} parent=1 // pred_region
      _
    $region17: #{tpu_custom_call.1} parent=1 // pred_fallthru
      _
    // Predicated region
    $region18: #{tpu_custom_call.1} parent=1 // pred_check
      _
    $region19: #{tpu_custom_call.1} parent=1 // pred_check_branch
      %23 = sbr.rel (0) target = $region21
    $region20: #{tpu_custom_call.1} parent=1 // pred_region
      _
    $region21: #{tpu_custom_call.1} parent=1 // pred_fallthru
      _
    // Predicated region
    $region22: #{tpu_custom_call.1} parent=1 // pred_check
      _
    $region23: #{tpu_custom_call.1} parent=1 // pred_check_branch
      %25 = sbr.rel (0) target = $region25
    $region24: #{tpu_custom_call.1} parent=1 // pred_region
      _
    $region25: #{tpu_custom_call.1} parent=1 // pred_fallthru
      _
    // Predicated region
    $region26: #{tpu_custom_call.1} parent=1 // pred_check
      _
    $region27: #{tpu_custom_call.1} parent=1 // pred_check_branch
      %27 = sbr.rel (0) target = $region29
    $region28: #{tpu_custom_call.1} parent=1 // pred_region
      _
    $region29: #{tpu_custom_call.1} parent=1 // pred_fallthru
      _
    // Predicated region
    $region30: #{tpu_custom_call.1} parent=1 // pred_check
      _
    $region31: #{tpu_custom_call.1} parent=1 // pred_check_branch
      %29 = sbr.rel (0) target = $region33
    $region32: #{tpu_custom_call.1} parent=1 // pred_region
      _
    $region33: #{tpu_custom_call.1} parent=1 // pred_fallthru
      _
    %31 = vst [vmem:[#allocation2] sm:$0xff] 0.0
    %32 = vst [vmem:[#allocation2 + $0x20] sm:$0xff] 0.0
    %33 = vst [vmem:[#allocation2 + $0x40] sm:$0x3] 0.0
    %vm34 = vcmask 1047680
    %35 = vst.msk [vmem:[#allocation2 + $0x10] sm:$0xff] %vm34, 0.0
    %36 = vst [vmem:[#allocation2 + $0x18] sm:$0xff] 0.0
    %37 = vst.msk [vmem:[#allocation2 + $0x30] sm:$0xff] %vm34, 0.0
    %38 = vst [vmem:[#allocation2 + $0x38] sm:$0xff] 0.0
    %vm39 = vcmask 1041536
    %40 = vst.msk [vmem:[#allocation2 + $0x50] sm:$0x3] %vm39, 0.0
    %41 = vst [vmem:[#allocation2 + $0x58] sm:$0x3] 0.0
    %v42 = vld [vmem:[%s0] sm:$0xff]
    %v43 = vld [vmem:[%s0 + $0x8] sm:$0xff]
    %v44 = vpack.c.bf16 %v42, %v42
    %v45 = vpack.c.bf16 %v43, %v43
    %v46 = vld [vmem:[%s1] sm:$0xf]
    %v47 = vld [vmem:[%s1 + $0x4] sm:$0xf]
    %v48 = vld [vmem:[%s1 + $0x8] sm:$0xf]
    %v49 = vld [vmem:[%s1 + $0xc] sm:$0xf]
    %v50 = vld [vmem:[%s1 + $0x10] sm:$0xf]
    %v51 = vld [vmem:[%s1 + $0x14] sm:$0xf]
    %v52 = vld [vmem:[%s1 + $0x18] sm:$0xf]
    %v53 = vld [vmem:[%s1 + $0x1c] sm:$0xf]
    %v54 = vld [vmem:[%s1 + $0x20] sm:$0xf]
    %v55 = vld [vmem:[%s1 + $0x24] sm:$0xf]
    %v56 = vld [vmem:[%s1 + $0x28] sm:$0xf]
    %v57 = vld [vmem:[%s1 + $0x2c] sm:$0xf]
    %v58 = vld [vmem:[%s1 + $0x30] sm:$0xf]
    %v59 = vld [vmem:[%s1 + $0x34] sm:$0xf]
    %v60 = vld [vmem:[%s1 + $0x38] sm:$0xf]
    %v61 = vld [vmem:[%s1 + $0x3c] sm:$0xf]
    %v62 = vld [vmem:[%s1 + $0x40] sm:$0xf]
    %v63 = vld [vmem:[%s1 + $0x44] sm:$0xf]
    %v82 = vunpack.c.l.b16 %v46
    %v83 = vunpack.c.l.b16 %v47
    %v84 = vunpack.c.l.b16 %v48
    %v85 = vunpack.c.l.b16 %v49
    %v86 = vunpack.c.l.b16 %v50
    %v87 = vunpack.c.l.b16 %v51
    %v88 = vunpack.c.l.b16 %v52
    %v89 = vunpack.c.l.b16 %v53
    %v90 = vunpack.c.l.b16 %v54
    %v91 = vunpack.c.l.b16 %v55
    %v92 = vunpack.c.l.b16 %v56
    %v93 = vunpack.c.l.b16 %v57
    %v94 = vunpack.c.l.b16 %v58
    %v95 = vunpack.c.l.b16 %v59
    %v96 = vunpack.c.l.b16 %v60
    %v97 = vunpack.c.l.b16 %v61
    %v98 = vunpack.c.l.b16 %v62
    %v99 = vunpack.c.l.b16 %v63
    %v100 = vpack.c.b16 %v83, %v82
    %v101 = vpack.c.b16 %v85, %v84
    %v102 = vpack.c.b16 %v87, %v86
    %v103 = vpack.c.b16 %v89, %v88
    %v104 = vpack.c.b16 %v91, %v90
    %v105 = vpack.c.b16 %v93, %v92
    %v106 = vpack.c.b16 %v95, %v94
    %v107 = vpack.c.b16 %v97, %v96
    %v108 = vpack.c.b16 %v99, %v98
    %vm118 = vcmask 130048
    %v120 = vsel %vm118, %v45, 0
    %122 = vmatprep.subr.bf16.mxu0 0
    %123 = vmatpush1.bf16.msra.mxu0 %v100
    %124 = vmatprep.subr.bf16.mxu0 0
    %125 = vmatpush1.bf16.msra.mxu0 %v101
    %126 = vmatprep.subr.bf16.mxu0 0
    %127 = vmatpush1.bf16.msra.mxu0 %v102
    %128 = vmatprep.subr.bf16.mxu0 0
    %129 = vmatpush1.bf16.msra.mxu0 %v103
    %130 = vmatprep.subr.bf16.mxu0 0
    %131 = vmatpush1.bf16.msra.mxu0 %v104
    %132 = vmatprep.subr.bf16.mxu0 0
    %133 = vmatpush1.bf16.msra.mxu0 %v105
    %134 = vmatprep.subr.bf16.mxu0 0
    %135 = vmatpush1.bf16.msra.mxu0 %v106
    %136 = vmatprep.subr.bf16.mxu0 0
    %137 = vmatpush1.bf16.msra.mxu0 %v107
    %138 = vmatprep.subr.bf16.mxu0 0
    %139 = vmatpush1.bf16.msra.mxu0 %v108
    %140 = vmatprep.subr.bf16.mxu0 0
    %141 = vmatpush1.bf16.msra.mxu0 0
    %142 = vmatprep.subr.bf16.mxu0 0
    %143 = vmatpush1.bf16.msra.mxu0 0
    %144 = vmatprep.subr.bf16.mxu0 0
    %145 = vmatpush1.bf16.msra.mxu0 0
    %146 = vmatprep.subr.bf16.mxu0 0
    %147 = vmatpush1.bf16.msra.mxu0 0
    %148 = vmatprep.subr.bf16.mxu0 0
    %149 = vmatpush1.bf16.msra.mxu0 0
    %150 = vmatprep.subr.bf16.mxu0 0
    %151 = vmatpush1.bf16.msra.mxu0 0
    %152 = vmatprep.subr.bf16.mxu0 0
    %153 = vmatpush1.bf16.msra.mxu0 0
    %154 = vmatprep.mubr.bf16.mxu0 %v120
    %155 = vmatmul.mubr.bf16.gmra.mrb[0].mxu0 %v44
    %v156 = vpop.f32.mrb[0].mxu0
    %v157 = vadd.f32 0.0, %v156
    %v158 = vpop.f32.mrb[0].mxu0
    %v159 = vpop.f32.mrb[0].mxu0
    %v160 = vpop.f32.mrb[0].mxu0
    %161 = vdwg.mxu0
    %v162 = vld [vmem:[%s2] sm:$0xf]
    %v163 = vpack.c.bf16 %v157, %v157
    %vm164 = vcmask 64512
    %v166 = vsel %vm164, %v162, 0
    %vm168 = vcmask 1043456
    %v170 = vsel %vm168, %v163, 0
    %172 = vmatprep.subr.bf16.mxu0 0
    %173 = vmatpush1.bf16.msra.mxu0 %v170
    %174 = vmatprep.subr.bf16.mxu0 0
    %175 = vmatpush1.bf16.msra.mxu0 0
    %176 = vmatprep.subr.bf16.mxu0 0
    %177 = vmatpush1.bf16.msra.mxu0 0
    %178 = vmatprep.subr.bf16.mxu0 0
    %179 = vmatpush1.bf16.msra.mxu0 0
    %180 = vmatprep.subr.bf16.mxu0 0
    %181 = vmatpush1.bf16.msra.mxu0 0
    %182 = vmatprep.subr.bf16.mxu0 0
    %183 = vmatpush1.bf16.msra.mxu0 0
    %184 = vmatprep.subr.bf16.mxu0 0
    %185 = vmatpush1.bf16.msra.mxu0 0
    %186 = vmatprep.subr.bf16.mxu0 0
    %187 = vmatpush1.bf16.msra.mxu0 0
    %188 = vmatprep.subr.bf16.mxu0 0
    %189 = vmatpush1.bf16.msra.mxu0 0
    %190 = vmatprep.subr.bf16.mxu0 0
    %191 = vmatpush1.bf16.msra.mxu0 0
    %192 = vmatprep.subr.bf16.mxu0 0
    %193 = vmatpush1.bf16.msra.mxu0 0
    %194 = vmatprep.subr.bf16.mxu0 0
    %195 = vmatpush1.bf16.msra.mxu0 0
    %196 = vmatprep.subr.bf16.mxu0 0
    %197 = vmatpush1.bf16.msra.mxu0 0
    %198 = vmatprep.subr.bf16.mxu0 0
    %199 = vmatpush1.bf16.msra.mxu0 0
    %200 = vmatprep.subr.bf16.mxu0 0
    %201 = vmatpush1.bf16.msra.mxu0 0
    %202 = vmatprep.subr.bf16.mxu0 0
    %203 = vmatpush1.bf16.msra.mxu0 0
    %204 = vmatprep.mubr.bf16.mxu0 0
    %205 = vmatmul.mubr.bf16.gmra.mrb[0].mxu0 %v166
    %v206 = vpop.f32.mrb[0].mxu0
    %v207 = vadd.f32 0.0, %v206
    %v208 = vpop.f32.mrb[0].mxu0
    %v209 = vpop.f32.mrb[0].mxu0
    %v210 = vpop.f32.mrb[0].mxu0
    %211 = vdwg.mxu0
    %v212 = vmax.f32 %v207, 0.0
    %v213 = vld [vmem:[%s3] sm:$0xff]
    %v214 = vmul.f32 %v212, %v213
    %v215 = vpack.c.bf16 %v214, %v214
    %v216 = vld [vmem:[%s4] sm:$0xff]
    %v217 = vld [vmem:[%s4 + $0x8] sm:$0xff]
    %v218 = vld [vmem:[%s4 + $0x10] sm:$0xff]
    %v219 = vld [vmem:[%s4 + $0x18] sm:$0xff]
    %v220 = vld [vmem:[%s4 + $0x20] sm:$0xff]
    %v221 = vld [vmem:[%s4 + $0x28] sm:$0xff]
    %v222 = vld [vmem:[%s4 + $0x30] sm:$0x11]
    %v230 = vunpack.c.l.b16 %v216
    %v231 = vunpack.c.h.b16 %v216
    %v232 = vunpack.c.l.b16 %v217
    %v233 = vunpack.c.h.b16 %v217
    %v234 = vunpack.c.l.b16 %v218
    %v235 = vunpack.c.h.b16 %v218
    %v236 = vunpack.c.l.b16 %v219
    %v237 = vunpack.c.h.b16 %v219
    %v238 = vunpack.c.l.b16 %v220
    %v239 = vunpack.c.h.b16 %v220
    %v240 = vunpack.c.l.b16 %v221
    %v241 = vunpack.c.h.b16 %v221
    %v242 = vunpack.c.l.b16 %v222
    %v243 = vunpack.c.h.b16 %v222
    %v244 = vpack.c.b16 %v232, %v230
    %v245 = vpack.c.b16 %v233, %v231
    %v246 = vpack.c.b16 %v236, %v234
    %v247 = vpack.c.b16 %v237, %v235
    %v248 = vpack.c.b16 %v240, %v238
    %v249 = vpack.c.b16 %v241, %v239
    %v250 = vpack.c.b16 %v242, %v242
    %v251 = vpack.c.b16 %v243, %v243
    %vm258 = vcmask 408576
    %v260 = vsel %vm258, %v215, 0
    %vm262 = vcmask 1040384
    %v264 = vsel %vm262, %v250, 0
    %v267 = vsel %vm262, %v251, 0
    %269 = vmatprep.subr.bf16.mxu0 %v245
    %270 = vmatpush1.bf16.msra.mxu0 %v244
    %271 = vmatprep.subr.bf16.mxu0 %v247
    %272 = vmatpush1.bf16.msra.mxu0 %v246
    %273 = vmatprep.subr.bf16.mxu0 %v249
    %274 = vmatpush1.bf16.msra.mxu0 %v248
    %275 = vmatprep.subr.bf16.mxu0 %v267
    %276 = vmatpush1.bf16.msra.mxu0 %v264
    %277 = vmatprep.subr.bf16.mxu0 0
    %278 = vmatpush1.bf16.msra.mxu0 0
    %279 = vmatprep.subr.bf16.mxu0 0
    %280 = vmatpush1.bf16.msra.mxu0 0
    %281 = vmatprep.subr.bf16.mxu0 0
    %282 = vmatpush1.bf16.msra.mxu0 0
    %283 = vmatprep.subr.bf16.mxu0 0
    %284 = vmatpush1.bf16.msra.mxu0 0
    %285 = vmatprep.subr.bf16.mxu0 0
    %286 = vmatpush1.bf16.msra.mxu0 0
    %287 = vmatprep.subr.bf16.mxu0 0
    %288 = vmatpush1.bf16.msra.mxu0 0
    %289 = vmatprep.subr.bf16.mxu0 0
    %290 = vmatpush1.bf16.msra.mxu0 0
    %291 = vmatprep.subr.bf16.mxu0 0
    %292 = vmatpush1.bf16.msra.mxu0 0
    %293 = vmatprep.subr.bf16.mxu0 0
    %294 = vmatpush1.bf16.msra.mxu0 0
    %295 = vmatprep.subr.bf16.mxu0 0
    %296 = vmatpush1.bf16.msra.mxu0 0
    %297 = vmatprep.subr.bf16.mxu0 0
    %298 = vmatpush1.bf16.msra.mxu0 0
    %299 = vmatprep.subr.bf16.mxu0 0
    %300 = vmatpush1.bf16.msra.mxu0 0
    %301 = vmatprep.mubr.bf16.mxu0 0
    %302 = vmatmul.mubr.bf16.gmra.mrb[0].mxu0 %v260
    %v303 = vpop.f32.mrb[0].mxu0
    %v304 = vadd.f32 0.0, %v303
    %v305 = vpop.f32.mrb[0].mxu0
    %v306 = vadd.f32 0.0, %v305
    %v307 = vpop.f32.mrb[0].mxu0
    %v308 = vpop.f32.mrb[0].mxu0
    %309 = vdwg.mxu0
    %v310 = vld [vmem:[%s5] sm:$0xf]
    %v311 = vld [vmem:[%s5 + $0x4] sm:$0xf]
    %v312 = vld [vmem:[%s5 + $0x8] sm:$0x1]
    %v313 = vld [vmem:[%s6] sm:$0xf]
    %v314 = vld [vmem:[%s6 + $0x4] sm:$0xf]
    %v315 = vld [vmem:[%s6 + $0x8] sm:$0x1]
    %v316 = vpack.c.bf16 %v304, %v304
    %v317 = vpack.c.bf16 %v306, %v306
    %v321 = vunpack.c.l.b16 %v313
    %v322 = vunpack.c.l.b16 %v314
    %v323 = vunpack.c.l.b16 %v315
    %v324 = vpack.c.b16 %v322, %v321
    %v325 = vpack.c.b16 %v323, %v323
    %v327 = vsel %vm164, %v324, 0
    %v330 = vsel %vm164, %v325, 0
    %v333 = vsel %vm168, %v316, 0
    %v336 = vsel %vm168, %v317, 0
    %338 = vmatprep.subr.bf16.mxu0 %v336
    %339 = vmatpush1.bf16.msra.mxu0 %v333
    %340 = vmatprep.subr.bf16.mxu0 0
    %341 = vmatpush1.bf16.msra.mxu0 0
    %342 = vmatprep.subr.bf16.mxu0 0
    %343 = vmatpush1.bf16.msra.mxu0 0
    %344 = vmatprep.subr.bf16.mxu0 0
    %345 = vmatpush1.bf16.msra.mxu0 0
    %346 = vmatprep.subr.bf16.mxu0 0
    %347 = vmatpush1.bf16.msra.mxu0 0
    %348 = vmatprep.subr.bf16.mxu0 0
    %349 = vmatpush1.bf16.msra.mxu0 0
    %350 = vmatprep.subr.bf16.mxu0 0
    %351 = vmatpush1.bf16.msra.mxu0 0
    %352 = vmatprep.subr.bf16.mxu0 0
    %353 = vmatpush1.bf16.msra.mxu0 0
    %354 = vmatprep.subr.bf16.mxu0 0
    %355 = vmatpush1.bf16.msra.mxu0 0
    %356 = vmatprep.subr.bf16.mxu0 0
    %357 = vmatpush1.bf16.msra.mxu0 0
    %358 = vmatprep.subr.bf16.mxu0 0
    %359 = vmatpush1.bf16.msra.mxu0 0
    %360 = vmatprep.subr.bf16.mxu0 0
    %361 = vmatpush1.bf16.msra.mxu0 0
    %362 = vmatprep.subr.bf16.mxu0 0
    %363 = vmatpush1.bf16.msra.mxu0 0
    %364 = vmatprep.subr.bf16.mxu0 0
    %365 = vmatpush1.bf16.msra.mxu0 0
    %366 = vmatprep.subr.bf16.mxu0 0
    %367 = vmatpush1.bf16.msra.mxu0 0
    %368 = vmatprep.subr.bf16.mxu0 0
    %369 = vmatpush1.bf16.msra.mxu0 0
    %370 = vmatprep.mubr.bf16.mxu0 0
    %371 = vmatmul.mubr.bf16.gmra.mrb[0].mxu0 %v327
    %v372 = vpop.f32.mrb[0].mxu0
    %v373 = vadd.f32 0.0, %v372
    %v374 = vpop.f32.mrb[0].mxu0
    %v375 = vadd.f32 0.0, %v374
    %v376 = vpop.f32.mrb[0].mxu0
    %v377 = vadd.f32 0.0, %v376
    %v378 = vpop.f32.mrb[0].mxu0
    %v379 = vadd.f32 0.0, %v378
    %380 = vmatprep.mubr.bf16.mxu0 0
    %381 = vmatmul.mubr.bf16.gmra.mrb[0].mxu0 %v330
    %v382 = vpop.f32.mrb[0].mxu0
    %v383 = vadd.f32 0.0, %v382
    %v384 = vpop.f32.mrb[0].mxu0
    %v385 = vadd.f32 0.0, %v384
    %v386 = vpop.f32.mrb[0].mxu0
    %v387 = vpop.f32.mrb[0].mxu0
    %388 = vdwg.mxu0
    %v392 = vunpack.c.l.b16 %v310
    %v393 = vunpack.c.l.b16 %v311
    %v394 = vunpack.c.l.b16 %v312
    %v395 = vpack.c.b16 %v393, %v392
    %v396 = vpack.c.b16 %v394, %v394
    %v398 = vsel %vm164, %v395, 0
    %v401 = vsel %vm164, %v396, 0
    %v404 = vsel %vm168, %v44, 0
    %v406 = vsel %vm168, %v45, 0
    %408 = vmatprep.subr.bf16.mxu0 %v406
    %409 = vmatpush1.bf16.msra.mxu0 %v404
    %410 = vmatprep.subr.bf16.mxu0 0
    %411 = vmatpush1.bf16.msra.mxu0 0
    %412 = vmatprep.subr.bf16.mxu0 0
    %413 = vmatpush1.bf16.msra.mxu0 0
    %414 = vmatprep.subr.bf16.mxu0 0
    %415 = vmatpush1.bf16.msra.mxu0 0
    %416 = vmatprep.subr.bf16.mxu0 0
    %417 = vmatpush1.bf16.msra.mxu0 0
    %418 = vmatprep.subr.bf16.mxu0 0
    %419 = vmatpush1.bf16.msra.mxu0 0
    %420 = vmatprep.subr.bf16.mxu0 0
    %421 = vmatpush1.bf16.msra.mxu0 0
    %422 = vmatprep.subr.bf16.mxu0 0
    %423 = vmatpush1.bf16.msra.mxu0 0
    %424 = vmatprep.subr.bf16.mxu0 0
    %425 = vmatpush1.bf16.msra.mxu0 0
    %426 = vmatprep.subr.bf16.mxu0 0
    %427 = vmatpush1.bf16.msra.mxu0 0
    %428 = vmatprep.subr.bf16.mxu0 0
    %429 = vmatpush1.bf16.msra.mxu0 0
    %430 = vmatprep.subr.bf16.mxu0 0
    %431 = vmatpush1.bf16.msra.mxu0 0
    %432 = vmatprep.subr.bf16.mxu0 0
    %433 = vmatpush1.bf16.msra.mxu0 0
    %434 = vmatprep.subr.bf16.mxu0 0
    %435 = vmatpush1.bf16.msra.mxu0 0
    %436 = vmatprep.subr.bf16.mxu0 0
    %437 = vmatpush1.bf16.msra.mxu0 0
    %438 = vmatprep.subr.bf16.mxu0 0
    %439 = vmatpush1.bf16.msra.mxu0 0
    %440 = vmatprep.mubr.bf16.mxu0 0
    %441 = vmatmul.mubr.bf16.gmra.mrb[0].mxu0 %v398
    %v442 = vpop.f32.mrb[0].mxu0
    %v443 = vadd.f32 %v373, %v442
    %v444 = vpop.f32.mrb[0].mxu0
    %v445 = vadd.f32 %v375, %v444
    %v446 = vpop.f32.mrb[0].mxu0
    %v447 = vadd.f32 %v377, %v446
    %v448 = vpop.f32.mrb[0].mxu0
    %v449 = vadd.f32 %v379, %v448
    %450 = vmatprep.mubr.bf16.mxu0 0
    %451 = vmatmul.mubr.bf16.gmra.mrb[0].mxu0 %v401
    %v452 = vpop.f32.mrb[0].mxu0
    %v453 = vadd.f32 %v383, %v452
    %v454 = vpop.f32.mrb[0].mxu0
    %v455 = vadd.f32 %v385, %v454
    %v456 = vpop.f32.mrb[0].mxu0
    %v457 = vpop.f32.mrb[0].mxu0
    %458 = vdwg.mxu0
    %459 = vst [vmem:[#allocation2 + $0x8] sm:$0xff] %v443
    %460 = vst.msk [vmem:[#allocation2 + $0x10] sm:$0xff] %vm118, %v445
    %461 = vst [vmem:[#allocation2 + $0x28] sm:$0xff] %v447
    %462 = vst.msk [vmem:[#allocation2 + $0x30] sm:$0xff] %vm118, %v449
    %463 = vst [vmem:[#allocation2 + $0x48] sm:$0x3] %v453
    %vm464 = vcmask 123904
    %465 = vst.msk [vmem:[#allocation2 + $0x50] sm:$0x3] %vm464, %v455
    %v466 = vld [vmem:[#allocation2] sm:$0x3]
    %v467 = vld [vmem:[#allocation2 + $0x8] sm:$0x3]
    %v468 = vld [vmem:[#allocation2 + $0x10] sm:$0x3]
    %v469 = vld [vmem:[%s7] sm:$0x3]
    %v471 = vlaneseq
    %v472 = vshrl.u32 %v471, 7
    %v473 = vsub.s32 0, %v472
    %v474 = vrot.slane %v469, %v473
    %v475 = vlaneseq
    %v476 = vshrl.u32 %v475, 7
    %v477 = vsub.s32 1, %v476
    %v478 = vrot.slane %v469, %v477
    %479 = vrot.lane.b32.xlu0 %v474, 115
    %v480 = vpop.permute.xlu0 %479
    %481 = vrot.lane.b32.xlu0 %v478, 115
    %v482 = vpop.permute.xlu0 %481
    %vm483 = vcmask 941056
    %v484 = vsel %vm483, %v480, %v482
    %v488 = vmul.f32 %v466, %v480
    %v489 = vmul.f32 %v467, %v484
    %v490 = vmul.f32 %v468, %v482
    %v491 = vadd.f32 %v488, 0.0
    %v492 = vadd.f32 %v489, 0.0
    %v493 = vadd.f32 %v490, 0.0
    %v494 = vld [vmem:[#allocation2] sm:$0xc]
    %v495 = vld [vmem:[#allocation2 + $0x8] sm:$0xc]
    %v496 = vld [vmem:[#allocation2 + $0x10] sm:$0xc]
    %s497 = scalar_lea.vmem %s7, 2
    %v498 = vld [vmem:[%s497] sm:$0x3]
    %v500 = vlaneseq
    %v501 = vshrl.u32 %v500, 7
    %v502 = vsub.s32 0, %v501
    %v503 = vrot.slane %v498, %v502
    %v504 = vlaneseq
    %v505 = vshrl.u32 %v504, 7
    %v506 = vsub.s32 1, %v505
    %v507 = vrot.slane %v498, %v506
    %508 = vrot.lane.b32.xlu0 %v503, 116
    %v509 = vpop.permute.xlu0 %508
    %510 = vrot.lane.b32.xlu0 %v507, 116
    %v511 = vpop.permute.xlu0 %510
    %vm512 = vcmask 949248
    %v513 = vsel %vm512, %v509, %v511
    %v517 = vmul.f32 %v494, %v509
    %v518 = vmul.f32 %v495, %v513
    %v519 = vmul.f32 %v496, %v511
    %v523 = vrot.slane %v517, 2
    %v524 = vrot.slane %v518, 2
    %v525 = vrot.slane %v519, 2
    %526 = vrot.lane.b32.xlu0 %v523, 127
    %v527 = vpop.permute.xlu0 %526
    %528 = vrot.lane.b32.xlu0 %v524, 127
    %v529 = vpop.permute.xlu0 %528
    %530 = vrot.lane.b32.xlu0 %v525, 127
    %v531 = vpop.permute.xlu0 %530
    %vm532 = vcmask 1039360
    %v533 = vsel %vm532, %v527, %v529
    %v534 = vsel %vm532, %v529, %v531
    %v538 = vadd.f32 %v491, %v533
    %v539 = vadd.f32 %v492, %v534
    %v540 = vadd.f32 %v493, %v531
    %v541 = vld [vmem:[#allocation2] sm:$0x30]
    %v542 = vld [vmem:[#allocation2 + $0x8] sm:$0x30]
    %v543 = vld [vmem:[#allocation2 + $0x10] sm:$0x30]
    %s544 = scalar_lea.vmem %s7, 4
    %v545 = vld [vmem:[%s544] sm:$0x3]
    %v547 = vlaneseq
    %v548 = vshrl.u32 %v547, 7
    %v549 = vsub.s32 0, %v548
    %v550 = vrot.slane %v545, %v549
    %v551 = vlaneseq
    %v552 = vshrl.u32 %v551, 7
    %v553 = vsub.s32 1, %v552
    %v554 = vrot.slane %v545, %v553
    %555 = vrot.lane.b32.xlu0 %v550, 117
    %v556 = vpop.permute.xlu0 %555
    %557 = vrot.lane.b32.xlu0 %v554, 117
    %v558 = vpop.permute.xlu0 %557
    %vm559 = vcmask 957440
    %v560 = vsel %vm559, %v556, %v558
    %v564 = vmul.f32 %v541, %v556
    %v565 = vmul.f32 %v542, %v560
    %v566 = vmul.f32 %v543, %v558
    %v570 = vrot.slane %v564, 4
    %v571 = vrot.slane %v565, 4
    %v572 = vrot.slane %v566, 4
    %573 = vrot.lane.b32.xlu0 %v570, 126
    %v574 = vpop.permute.xlu0 %573
    %575 = vrot.lane.b32.xlu0 %v571, 126
    %v576 = vpop.permute.xlu0 %575
    %577 = vrot.lane.b32.xlu0 %v572, 126
    %v578 = vpop.permute.xlu0 %577
    %vm579 = vcmask 1031168
    %v580 = vsel %vm579, %v574, %v576
    %v581 = vsel %vm579, %v576, %v578
    %v585 = vadd.f32 %v538, %v580
    %v586 = vadd.f32 %v539, %v581
    %v587 = vadd.f32 %v540, %v578
    %v588 = vld [vmem:[#allocation2] sm:$0xc0]
    %v589 = vld [vmem:[#allocation2 + $0x8] sm:$0xc0]
    %v590 = vld [vmem:[#allocation2 + $0x10] sm:$0xc0]
    %s591 = scalar_lea.vmem %s7, 6
    %v592 = vld [vmem:[%s591] sm:$0x3]
    %v594 = vlaneseq
    %v595 = vshrl.u32 %v594, 7
    %v596 = vsub.s32 0, %v595
    %v597 = vrot.slane %v592, %v596
    %v598 = vlaneseq
    %v599 = vshrl.u32 %v598, 7
    %v600 = vsub.s32 1, %v599
    %v601 = vrot.slane %v592, %v600
    %602 = vrot.lane.b32.xlu0 %v597, 127
    %v603 = vpop.permute.xlu0 %602
    %604 = vrot.lane.b32.xlu0 %v601, 127
    %v605 = vpop.permute.xlu0 %604
    %v606 = vsel %vm532, %v603, %v605
    %v610 = vmul.f32 %v588, %v603
    %v611 = vmul.f32 %v589, %v606
    %v612 = vmul.f32 %v590, %v605
    %v616 = vrot.slane %v610, 6
    %v617 = vrot.slane %v611, 6
    %v618 = vrot.slane %v612, 6
    %619 = vrot.lane.b32.xlu0 %v616, 116
    %v620 = vpop.permute.xlu0 %619
    %621 = vrot.lane.b32.xlu0 %v617, 116
    %v622 = vpop.permute.xlu0 %621
    %623 = vrot.lane.b32.xlu0 %v618, 116
    %v624 = vpop.permute.xlu0 %623
    %v625 = vsel %vm512, %v620, %v622
    %v626 = vsel %vm512, %v622, %v624
    %v630 = vadd.f32 %v585, %v625
    %v631 = vadd.f32 %v586, %v626
    %v632 = vadd.f32 %v587, %v624
    %v633 = vld [vmem:[#allocation2 + $0x28] sm:$0x3]
    %v634 = vld [vmem:[#allocation2 + $0x30] sm:$0x3]
    %s635 = scalar_lea.vmem %s7, 8
    %v636 = vld [vmem:[%s635] sm:$0x3]
    %v638 = vlaneseq
    %v639 = vshrl.u32 %v638, 7
    %v640 = vsub.s32 0, %v639
    %v641 = vrot.slane %v636, %v640
    %v642 = vlaneseq
    %v643 = vshrl.u32 %v642, 7
    %v644 = vsub.s32 1, %v643
    %v645 = vrot.slane %v636, %v644
    %v648 = vmul.f32 %v633, %v641
    %v649 = vmul.f32 %v634, %v645
    %652 = vrot.lane.b32.xlu0 %v648, 115
    %v653 = vpop.permute.xlu0 %652
    %654 = vrot.lane.b32.xlu0 %v649, 115
    %v655 = vpop.permute.xlu0 %654
    %v656 = vsel %vm483, %v653, %v655
    %v660 = vadd.f32 %v630, %v653
    %v661 = vadd.f32 %v631, %v656
    %v662 = vadd.f32 %v632, %v655
    %v663 = vld [vmem:[#allocation2 + $0x28] sm:$0xc]
    %v664 = vld [vmem:[#allocation2 + $0x30] sm:$0xc]
    %v665 = vld [vmem:[#allocation2 + $0x38] sm:$0xc]
    %s666 = scalar_lea.vmem %s7, 10
    %v667 = vld [vmem:[%s666] sm:$0x3]
    %v669 = vlaneseq
    %v670 = vshrl.u32 %v669, 7
    %v671 = vsub.s32 0, %v670
    %v672 = vrot.slane %v667, %v671
    %v673 = vlaneseq
    %v674 = vshrl.u32 %v673, 7
    %v675 = vsub.s32 1, %v674
    %v676 = vrot.slane %v667, %v675
    %677 = vrot.lane.b32.xlu0 %v672, 1
    %v678 = vpop.permute.xlu0 %677
    %679 = vrot.lane.b32.xlu0 %v676, 1
    %v680 = vpop.permute.xlu0 %679
    %vm681 = vcmask 7168
    %v682 = vsel %vm681, %v678, %v680
    %v686 = vmul.f32 %v663, %v678
    %v687 = vmul.f32 %v664, %v682
    %v688 = vmul.f32 %v665, %v680
    %v692 = vrot.slane %v686, 2
    %v693 = vrot.slane %v687, 2
    %v694 = vrot.slane %v688, 2
    %695 = vrot.lane.b32.xlu0 %v692, 114
    %v696 = vpop.permute.xlu0 %695
    %697 = vrot.lane.b32.xlu0 %v693, 114
    %v698 = vpop.permute.xlu0 %697
    %699 = vrot.lane.b32.xlu0 %v694, 114
    %v700 = vpop.permute.xlu0 %699
    %vm701 = vcmask 932864
    %v702 = vsel %vm701, %v696, %v698
    %v703 = vsel %vm701, %v698, %v700
    %v707 = vadd.f32 %v660, %v696
    %v708 = vadd.f32 %v661, %v702
    %v709 = vadd.f32 %v662, %v703
    %v710 = vld [vmem:[#allocation2 + $0x28] sm:$0x30]
    %v711 = vld [vmem:[#allocation2 + $0x30] sm:$0x30]
    %v712 = vld [vmem:[#allocation2 + $0x38] sm:$0x30]
    %s713 = scalar_lea.vmem %s7, 12
    %v714 = vld [vmem:[%s713] sm:$0x3]
    %v716 = vlaneseq
    %v717 = vshrl.u32 %v716, 7
    %v718 = vsub.s32 0, %v717
    %v719 = vrot.slane %v714, %v718
    %v720 = vlaneseq
    %v721 = vshrl.u32 %v720, 7
    %v722 = vsub.s32 1, %v721
    %v723 = vrot.slane %v714, %v722
    %724 = vrot.lane.b32.xlu0 %v719, 11
    %v725 = vpop.permute.xlu0 %724
    %726 = vrot.lane.b32.xlu0 %v723, 11
    %v727 = vpop.permute.xlu0 %726
    %vm728 = vcmask 89088
    %v729 = vsel %vm728, %v725, %v727
    %v733 = vmul.f32 %v710, %v725
    %v734 = vmul.f32 %v711, %v729
    %v735 = vmul.f32 %v712, %v727
    %v739 = vrot.slane %v733, 4
    %v740 = vrot.slane %v734, 4
    %v741 = vrot.slane %v735, 4
    %742 = vrot.lane.b32.xlu0 %v739, 104
    %v743 = vpop.permute.xlu0 %742
    %744 = vrot.lane.b32.xlu0 %v740, 104
    %v745 = vpop.permute.xlu0 %744
    %746 = vrot.lane.b32.xlu0 %v741, 104
    %v747 = vpop.permute.xlu0 %746
    %vm748 = vcmask 850944
    %v749 = vsel %vm748, %v743, %v745
    %v750 = vsel %vm748, %v745, %v747
    %v754 = vadd.f32 %v707, %v743
    %v755 = vadd.f32 %v708, %v749
    %v756 = vadd.f32 %v709, %v750
    %v757 = vld [vmem:[#allocation2 + $0x28] sm:$0xc0]
    %v758 = vld [vmem:[#allocation2 + $0x30] sm:$0xc0]
    %v759 = vld [vmem:[#allocation2 + $0x38] sm:$0xc0]
    %s760 = scalar_lea.vmem %s7, 14
    %v761 = vld [vmem:[%s760] sm:$0x3]
    %v763 = vlaneseq
    %v764 = vshrl.u32 %v763, 7
    %v765 = vsub.s32 0, %v764
    %v766 = vrot.slane %v761, %v765
    %v767 = vlaneseq
    %v768 = vshrl.u32 %v767, 7
    %v769 = vsub.s32 1, %v768
    %v770 = vrot.slane %v761, %v769
    %771 = vrot.lane.b32.xlu0 %v766, 12
    %v772 = vpop.permute.xlu0 %771
    %773 = vrot.lane.b32.xlu0 %v770, 12
    %v774 = vpop.permute.xlu0 %773
    %vm775 = vcmask 97280
    %v776 = vsel %vm775, %v772, %v774
    %v780 = vmul.f32 %v757, %v772
    %v781 = vmul.f32 %v758, %v776
    %v782 = vmul.f32 %v759, %v774
    %v786 = vrot.slane %v780, 6
    %v787 = vrot.slane %v781, 6
    %v788 = vrot.slane %v782, 6
    %789 = vrot.lane.b32.xlu0 %v786, 103
    %v790 = vpop.permute.xlu0 %789
    %791 = vrot.lane.b32.xlu0 %v787, 103
    %v792 = vpop.permute.xlu0 %791
    %793 = vrot.lane.b32.xlu0 %v788, 103
    %v794 = vpop.permute.xlu0 %793
    %vm795 = vcmask 842752
    %v796 = vsel %vm795, %v790, %v792
    %v797 = vsel %vm795, %v792, %v794
    %v801 = vadd.f32 %v754, %v790
    %v802 = vadd.f32 %v755, %v796
    %v803 = vadd.f32 %v756, %v797
    %v804 = vld [vmem:[#allocation2 + $0x48] sm:$0x3]
    %v805 = vld [vmem:[#allocation2 + $0x50] sm:$0x3]
    %v806 = vld [vmem:[#allocation2 + $0x58] sm:$0x3]
    %s807 = scalar_lea.vmem %s7, 16
    %v808 = vld [vmem:[%s807] sm:$0x3]
    %v810 = vlaneseq
    %v811 = vshrl.u32 %v810, 7
    %v812 = vsub.s32 0, %v811
    %v813 = vrot.slane %v808, %v812
    %v814 = vlaneseq
    %v815 = vshrl.u32 %v814, 7
    %v816 = vsub.s32 1, %v815
    %v817 = vrot.slane %v808, %v816
    %818 = vrot.lane.b32.xlu0 %v813, 13
    %v819 = vpop.permute.xlu0 %818
    %820 = vrot.lane.b32.xlu0 %v817, 13
    %v821 = vpop.permute.xlu0 %820
    %vm822 = vcmask 105472
    %v823 = vsel %vm822, %v819, %v821
    %v827 = vmul.f32 %v804, %v819
    %v828 = vmul.f32 %v805, %v823
    %v829 = vmul.f32 %v806, %v821
    %833 = vrot.lane.b32.xlu0 %v827, 102
    %v834 = vpop.permute.xlu0 %833
    %835 = vrot.lane.b32.xlu0 %v828, 102
    %v836 = vpop.permute.xlu0 %835
    %837 = vrot.lane.b32.xlu0 %v829, 102
    %v838 = vpop.permute.xlu0 %837
    %vm839 = vcmask 834560
    %v840 = vsel %vm839, %v834, %v836
    %v841 = vsel %vm839, %v836, %v838
    %v845 = vadd.f32 %v801, %v834
    %v846 = vadd.f32 %v802, %v840
    %v847 = vadd.f32 %v803, %v841
    %v848 = vmax.f32 %v845, 0.0
    %v849 = vmax.f32 %v846, 0.0
    %v850 = vmax.f32 %v847, 0.0
    %v854 = vcombine.low %v848, %v849
    %v856 = vunpack.c.l.s4 1983009808
    %v857 = vunpack.c.0.s8 %v856
    %v858 = vlaneseq
    %v859 = vshrl.u32 %v858, 7
    %v860 = vsub.s32 %v857, %v859
    %v861 = vrot.slane %v854, %v860
    %v863 = vunpack.c.l.s4 1983009808
    %v864 = vunpack.c.0.s8 %v863
    %v865 = vlaneseq
    %v866 = vshrl.u32 %v865, 7
    %v867 = vsub.s32 %v864, %v866
    %v868 = vrot.slane %v850, %v867
    %v869 = vcombine.low %v861, %v868
    %870 = vrot.lane.b32.xlu0 %v869, 13
    %v871 = vpop.permute.xlu0 %870
    %v872 = vrot.slane %v871, 2
    %v873 = vsel %vm822, %v871, %v872
    %875 = vst [vmem:[#allocation3] sm:$0xf] %v873
    %s876 = scalar_lea.vmem %s0, 16
    %v877 = vld [vmem:[%s876] sm:$0xff]
    %v878 = vld [vmem:[%s876 + $0x8] sm:$0xff]
    %v879 = vpack.c.bf16 %v877, %v877
    %v880 = vpack.c.bf16 %v878, %v878
    %v881 = vld [vmem:[%s1] sm:$0xf]
    %v882 = vld [vmem:[%s1 + $0x4] sm:$0xf]
    %v883 = vld [vmem:[%s1 + $0x8] sm:$0xf]
    %v884 = vld [vmem:[%s1 + $0xc] sm:$0xf]
    %v885 = vld [vmem:[%s1 + $0x10] sm:$0xf]
    %v886 = vld [vmem:[%s1 + $0x14] sm:$0xf]
    %v887 = vld [vmem:[%s1 + $0x18] sm:$0xf]
    %v888 = vld [vmem:[%s1 + $0x1c] sm:$0xf]
    %v889 = vld [vmem:[%s1 + $0x20] sm:$0xf]
    %v890 = vld [vmem:[%s1 + $0x24] sm:$0xf]
    %v891 = vld [vmem:[%s1 + $0x28] sm:$0xf]
    %v892 = vld [vmem:[%s1 + $0x2c] sm:$0xf]
    %v893 = vld [vmem:[%s1 + $0x30] sm:$0xf]
    %v894 = vld [vmem:[%s1 + $0x34] sm:$0xf]
    %v895 = vld [vmem:[%s1 + $0x38] sm:$0xf]
    %v896 = vld [vmem:[%s1 + $0x3c] sm:$0xf]
    %v897 = vld [vmem:[%s1 + $0x40] sm:$0xf]
    %v898 = vld [vmem:[%s1 + $0x44] sm:$0xf]
    %v917 = vunpack.c.l.b16 %v881
    %v918 = vunpack.c.l.b16 %v882
    %v919 = vunpack.c.l.b16 %v883
    %v920 = vunpack.c.l.b16 %v884
    %v921 = vunpack.c.l.b16 %v885
    %v922 = vunpack.c.l.b16 %v886
    %v923 = vunpack.c.l.b16 %v887
    %v924 = vunpack.c.l.b16 %v888
    %v925 = vunpack.c.l.b16 %v889
    %v926 = vunpack.c.l.b16 %v890
    %v927 = vunpack.c.l.b16 %v891
    %v928 = vunpack.c.l.b16 %v892
    %v929 = vunpack.c.l.b16 %v893
    %v930 = vunpack.c.l.b16 %v894
    %v931 = vunpack.c.l.b16 %v895
    %v932 = vunpack.c.l.b16 %v896
    %v933 = vunpack.c.l.b16 %v897
    %v934 = vunpack.c.l.b16 %v898
    %v935 = vpack.c.b16 %v918, %v917
    %v936 = vpack.c.b16 %v920, %v919
    %v937 = vpack.c.b16 %v922, %v921
    %v938 = vpack.c.b16 %v924, %v923
    %v939 = vpack.c.b16 %v926, %v925
    %v940 = vpack.c.b16 %v928, %v927
    %v941 = vpack.c.b16 %v930, %v929
    %v942 = vpack.c.b16 %v932, %v931
    %v943 = vpack.c.b16 %v934, %v933
    %v954 = vsel %vm118, %v880, 0
    %956 = vmatprep.subr.bf16.mxu0 0
    %957 = vmatpush1.bf16.msra.mxu0 %v935
    %958 = vmatprep.subr.bf16.mxu0 0
    %959 = vmatpush1.bf16.msra.mxu0 %v936
    %960 = vmatprep.subr.bf16.mxu0 0
    %961 = vmatpush1.bf16.msra.mxu0 %v937
    %962 = vmatprep.subr.bf16.mxu0 0
    %963 = vmatpush1.bf16.msra.mxu0 %v938
    %964 = vmatprep.subr.bf16.mxu0 0
    %965 = vmatpush1.bf16.msra.mxu0 %v939
    %966 = vmatprep.subr.bf16.mxu0 0
    %967 = vmatpush1.bf16.msra.mxu0 %v940
    %968 = vmatprep.subr.bf16.mxu0 0
    %969 = vmatpush1.bf16.msra.mxu0 %v941
    %970 = vmatprep.subr.bf16.mxu0 0
    %971 = vmatpush1.bf16.msra.mxu0 %v942
    %972 = vmatprep.subr.bf16.mxu0 0
    %973 = vmatpush1.bf16.msra.mxu0 %v943
    %974 = vmatprep.subr.bf16.mxu0 0
    %975 = vmatpush1.bf16.msra.mxu0 0
    %976 = vmatprep.subr.bf16.mxu0 0
    %977 = vmatpush1.bf16.msra.mxu0 0
    %978 = vmatprep.subr.bf16.mxu0 0
    %979 = vmatpush1.bf16.msra.mxu0 0
    %980 = vmatprep.subr.bf16.mxu0 0
    %981 = vmatpush1.bf16.msra.mxu0 0
    %982 = vmatprep.subr.bf16.mxu0 0
    %983 = vmatpush1.bf16.msra.mxu0 0
    %984 = vmatprep.subr.bf16.mxu0 0
    %985 = vmatpush1.bf16.msra.mxu0 0
    %986 = vmatprep.subr.bf16.mxu0 0
    %987 = vmatpush1.bf16.msra.mxu0 0
    %988 = vmatprep.mubr.bf16.mxu0 %v954
    %989 = vmatmul.mubr.bf16.gmra.mrb[0].mxu0 %v879
    %v990 = vpop.f32.mrb[0].mxu0
    %v991 = vadd.f32 0.0, %v990
    %v992 = vpop.f32.mrb[0].mxu0
    %v993 = vpop.f32.mrb[0].mxu0
    %v994 = vpop.f32.mrb[0].mxu0
    %995 = vdwg.mxu0
    %v996 = vld [vmem:[%s2] sm:$0xf]
    %v997 = vpack.c.bf16 %v991, %v991
    %v999 = vsel %vm164, %v996, 0
    %v1002 = vsel %vm168, %v997, 0
    %1004 = vmatprep.subr.bf16.mxu0 0
    %1005 = vmatpush1.bf16.msra.mxu0 %v1002
    %1006 = vmatprep.subr.bf16.mxu0 0
    %1007 = vmatpush1.bf16.msra.mxu0 0
    %1008 = vmatprep.subr.bf16.mxu0 0
    %1009 = vmatpush1.bf16.msra.mxu0 0
    %1010 = vmatprep.subr.bf16.mxu0 0
    %1011 = vmatpush1.bf16.msra.mxu0 0
    %1012 = vmatprep.subr.bf16.mxu0 0
    %1013 = vmatpush1.bf16.msra.mxu0 0
    %1014 = vmatprep.subr.bf16.mxu0 0
    %1015 = vmatpush1.bf16.msra.mxu0 0
    %1016 = vmatprep.subr.bf16.mxu0 0
    %1017 = vmatpush1.bf16.msra.mxu0 0
    %1018 = vmatprep.subr.bf16.mxu0 0
    %1019 = vmatpush1.bf16.msra.mxu0 0
    %1020 = vmatprep.subr.bf16.mxu0 0
    %1021 = vmatpush1.bf16.msra.mxu0 0
    %1022 = vmatprep.subr.bf16.mxu0 0
    %1023 = vmatpush1.bf16.msra.mxu0 0
    %1024 = vmatprep.subr.bf16.mxu0 0
    %1025 = vmatpush1.bf16.msra.mxu0 0
    %1026 = vmatprep.subr.bf16.mxu0 0
    %1027 = vmatpush1.bf16.msra.mxu0 0
    %1028 = vmatprep.subr.bf16.mxu0 0
    %1029 = vmatpush1.bf16.msra.mxu0 0
    %1030 = vmatprep.subr.bf16.mxu0 0
    %1031 = vmatpush1.bf16.msra.mxu0 0
    %1032 = vmatprep.subr.bf16.mxu0 0
    %1033 = vmatpush1.bf16.msra.mxu0 0
    %1034 = vmatprep.subr.bf16.mxu0 0
    %1035 = vmatpush1.bf16.msra.mxu0 0
    %1036 = vmatprep.mubr.bf16.mxu0 0
    %1037 = vmatmul.mubr.bf16.gmra.mrb[0].mxu0 %v999
    %v1038 = vpop.f32.mrb[0].mxu0
    %v1039 = vadd.f32 0.0, %v1038
    %v1040 = vpop.f32.mrb[0].mxu0
    %v1041 = vpop.f32.mrb[0].mxu0
    %v1042 = vpop.f32.mrb[0].mxu0
    %1043 = vdwg.mxu0
    %v1044 = vmax.f32 %v1039, 0.0
    %v1045 = vld [vmem:[%s3] sm:$0xff]
    %v1046 = vmul.f32 %v1044, %v1045
    %v1047 = vpack.c.bf16 %v1046, %v1046
    %v1048 = vld [vmem:[%s4] sm:$0xff]
    %v1049 = vld [vmem:[%s4 + $0x8] sm:$0xff]
    %v1050 = vld [vmem:[%s4 + $0x10] sm:$0xff]
    %v1051 = vld [vmem:[%s4 + $0x18] sm:$0xff]
    %v1052 = vld [vmem:[%s4 + $0x20] sm:$0xff]
    %v1053 = vld [vmem:[%s4 + $0x28] sm:$0xff]
    %v1054 = vld [vmem:[%s4 + $0x30] sm:$0x11]
    %v1062 = vunpack.c.l.b16 %v1048
    %v1063 = vunpack.c.h.b16 %v1048
    %v1064 = vunpack.c.l.b16 %v1049
    %v1065 = vunpack.c.h.b16 %v1049
    %v1066 = vunpack.c.l.b16 %v1050
    %v1067 = vunpack.c.h.b16 %v1050
    %v1068 = vunpack.c.l.b16 %v1051
    %v1069 = vunpack.c.h.b16 %v1051
    %v1070 = vunpack.c.l.b16 %v1052
    %v1071 = vunpack.c.h.b16 %v1052
    %v1072 = vunpack.c.l.b16 %v1053
    %v1073 = vunpack.c.h.b16 %v1053
    %v1074 = vunpack.c.l.b16 %v1054
    %v1075 = vunpack.c.h.b16 %v1054
    %v1076 = vpack.c.b16 %v1064, %v1062
    %v1077 = vpack.c.b16 %v1065, %v1063
    %v1078 = vpack.c.b16 %v1068, %v1066
    %v1079 = vpack.c.b16 %v1069, %v1067
    %v1080 = vpack.c.b16 %v1072, %v1070
    %v1081 = vpack.c.b16 %v1073, %v1071
    %v1082 = vpack.c.b16 %v1074, %v1074
    %v1083 = vpack.c.b16 %v1075, %v1075
    %v1091 = vsel %vm258, %v1047, 0
    %v1094 = vsel %vm262, %v1082, 0
    %v1097 = vsel %vm262, %v1083, 0
    %1099 = vmatprep.subr.bf16.mxu0 %v1077
    %1100 = vmatpush1.bf16.msra.mxu0 %v1076
    %1101 = vmatprep.subr.bf16.mxu0 %v1079
    %1102 = vmatpush1.bf16.msra.mxu0 %v1078
    %1103 = vmatprep.subr.bf16.mxu0 %v1081
    %1104 = vmatpush1.bf16.msra.mxu0 %v1080
    %1105 = vmatprep.subr.bf16.mxu0 %v1097
    %1106 = vmatpush1.bf16.msra.mxu0 %v1094
    %1107 = vmatprep.subr.bf16.mxu0 0
    %1108 = vmatpush1.bf16.msra.mxu0 0
    %1109 = vmatprep.subr.bf16.mxu0 0
    %1110 = vmatpush1.bf16.msra.mxu0 0
    %1111 = vmatprep.subr.bf16.mxu0 0
    %1112 = vmatpush1.bf16.msra.mxu0 0
    %1113 = vmatprep.subr.bf16.mxu0 0
    %1114 = vmatpush1.bf16.msra.mxu0 0
    %1115 = vmatprep.subr.bf16.mxu0 0
    %1116 = vmatpush1.bf16.msra.mxu0 0
    %1117 = vmatprep.subr.bf16.mxu0 0
    %1118 = vmatpush1.bf16.msra.mxu0 0
    %1119 = vmatprep.subr.bf16.mxu0 0
    %1120 = vmatpush1.bf16.msra.mxu0 0
    %1121 = vmatprep.subr.bf16.mxu0 0
    %1122 = vmatpush1.bf16.msra.mxu0 0
    %1123 = vmatprep.subr.bf16.mxu0 0
    %1124 = vmatpush1.bf16.msra.mxu0 0
    %1125 = vmatprep.subr.bf16.mxu0 0
    %1126 = vmatpush1.bf16.msra.mxu0 0
    %1127 = vmatprep.subr.bf16.mxu0 0
    %1128 = vmatpush1.bf16.msra.mxu0 0
    %1129 = vmatprep.subr.bf16.mxu0 0
    %1130 = vmatpush1.bf16.msra.mxu0 0
    %1131 = vmatprep.mubr.bf16.mxu0 0
    %1132 = vmatmul.mubr.bf16.gmra.mrb[0].mxu0 %v1091
    %v1133 = vpop.f32.mrb[0].mxu0
    %v1134 = vadd.f32 0.0, %v1133
    %v1135 = vpop.f32.mrb[0].mxu0
    %v1136 = vadd.f32 0.0, %v1135
    %v1137 = vpop.f32.mrb[0].mxu0
    %v1138 = vpop.f32.mrb[0].mxu0
    %1139 = vdwg.mxu0
    %v1140 = vld [vmem:[%s5] sm:$0xf]
    %v1141 = vld [vmem:[%s5 + $0x4] sm:$0xf]
    %v1142 = vld [vmem:[%s5 + $0x8] sm:$0x1]
    %v1143 = vld [vmem:[%s6] sm:$0xf]
    %v1144 = vld [vmem:[%s6 + $0x4] sm:$0xf]
    %v1145 = vld [vmem:[%s6 + $0x8] sm:$0x1]
    %v1146 = vpack.c.bf16 %v1134, %v1134
    %v1147 = vpack.c.bf16 %v1136, %v1136
    %v1151 = vunpack.c.l.b16 %v1143
    %v1152 = vunpack.c.l.b16 %v1144
    %v1153 = vunpack.c.l.b16 %v1145
    %v1154 = vpack.c.b16 %v1152, %v1151
    %v1155 = vpack.c.b16 %v1153, %v1153
    %v1157 = vsel %vm164, %v1154, 0
    %v1160 = vsel %vm164, %v1155, 0
    %v1163 = vsel %vm168, %v1146, 0
    %v1166 = vsel %vm168, %v1147, 0
    %1168 = vmatprep.subr.bf16.mxu0 %v1166
    %1169 = vmatpush1.bf16.msra.mxu0 %v1163
    %1170 = vmatprep.subr.bf16.mxu0 0
    %1171 = vmatpush1.bf16.msra.mxu0 0
    %1172 = vmatprep.subr.bf16.mxu0 0
    %1173 = vmatpush1.bf16.msra.mxu0 0
    %1174 = vmatprep.subr.bf16.mxu0 0
    %1175 = vmatpush1.bf16.msra.mxu0 0
    %1176 = vmatprep.subr.bf16.mxu0 0
    %1177 = vmatpush1.bf16.msra.mxu0 0
    %1178 = vmatprep.subr.bf16.mxu0 0
    %1179 = vmatpush1.bf16.msra.mxu0 0
    %1180 = vmatprep.subr.bf16.mxu0 0
    %1181 = vmatpush1.bf16.msra.mxu0 0
    %1182 = vmatprep.subr.bf16.mxu0 0
    %1183 = vmatpush1.bf16.msra.mxu0 0
    %1184 = vmatprep.subr.bf16.mxu0 0
    %1185 = vmatpush1.bf16.msra.mxu0 0
    %1186 = vmatprep.subr.bf16.mxu0 0
    %1187 = vmatpush1.bf16.msra.mxu0 0
    %1188 = vmatprep.subr.bf16.mxu0 0
    %1189 = vmatpush1.bf16.msra.mxu0 0
    %1190 = vmatprep.subr.bf16.mxu0 0
    %1191 = vmatpush1.bf16.msra.mxu0 0
    %1192 = vmatprep.subr.bf16.mxu0 0
    %1193 = vmatpush1.bf16.msra.mxu0 0
    %1194 = vmatprep.subr.bf16.mxu0 0
    %1195 = vmatpush1.bf16.msra.mxu0 0
    %1196 = vmatprep.subr.bf16.mxu0 0
    %1197 = vmatpush1.bf16.msra.mxu0 0
    %1198 = vmatprep.subr.bf16.mxu0 0
    %1199 = vmatpush1.bf16.msra.mxu0 0
    %1200 = vmatprep.mubr.bf16.mxu0 0
    %1201 = vmatmul.mubr.bf16.gmra.mrb[0].mxu0 %v1157
    %v1202 = vpop.f32.mrb[0].mxu0
    %v1203 = vadd.f32 0.0, %v1202
    %v1204 = vpop.f32.mrb[0].mxu0
    %v1205 = vadd.f32 0.0, %v1204
    %v1206 = vpop.f32.mrb[0].mxu0
    %v1207 = vadd.f32 0.0, %v1206
    %v1208 = vpop.f32.mrb[0].mxu0
    %v1209 = vadd.f32 0.0, %v1208
    %1210 = vmatprep.mubr.bf16.mxu0 0
    %1211 = vmatmul.mubr.bf16.gmra.mrb[0].mxu0 %v1160
    %v1212 = vpop.f32.mrb[0].mxu0
    %v1213 = vadd.f32 0.0, %v1212
    %v1214 = vpop.f32.mrb[0].mxu0
    %v1215 = vadd.f32 0.0, %v1214
    %v1216 = vpop.f32.mrb[0].mxu0
    %v1217 = vpop.f32.mrb[0].mxu0
    %1218 = vdwg.mxu0
    %v1222 = vunpack.c.l.b16 %v1140
    %v1223 = vunpack.c.l.b16 %v1141
    %v1224 = vunpack.c.l.b16 %v1142
    %v1225 = vpack.c.b16 %v1223, %v1222
    %v1226 = vpack.c.b16 %v1224, %v1224
    %v1228 = vsel %vm164, %v1225, 0
    %v1231 = vsel %vm164, %v1226, 0
    %v1234 = vsel %vm168, %v879, 0
    %v1236 = vsel %vm168, %v880, 0
    %1238 = vmatprep.subr.bf16.mxu0 %v1236
    %1239 = vmatpush1.bf16.msra.mxu0 %v1234
    %1240 = vmatprep.subr.bf16.mxu0 0
    %1241 = vmatpush1.bf16.msra.mxu0 0
    %1242 = vmatprep.subr.bf16.mxu0 0
    %1243 = vmatpush1.bf16.msra.mxu0 0
    %1244 = vmatprep.subr.bf16.mxu0 0
    %1245 = vmatpush1.bf16.msra.mxu0 0
    %1246 = vmatprep.subr.bf16.mxu0 0
    %1247 = vmatpush1.bf16.msra.mxu0 0
    %1248 = vmatprep.subr.bf16.mxu0 0
    %1249 = vmatpush1.bf16.msra.mxu0 0
    %1250 = vmatprep.subr.bf16.mxu0 0
    %1251 = vmatpush1.bf16.msra.mxu0 0
    %1252 = vmatprep.subr.bf16.mxu0 0
    %1253 = vmatpush1.bf16.msra.mxu0 0
    %1254 = vmatprep.subr.bf16.mxu0 0
    %1255 = vmatpush1.bf16.msra.mxu0 0
    %1256 = vmatprep.subr.bf16.mxu0 0
    %1257 = vmatpush1.bf16.msra.mxu0 0
    %1258 = vmatprep.subr.bf16.mxu0 0
    %1259 = vmatpush1.bf16.msra.mxu0 0
    %1260 = vmatprep.subr.bf16.mxu0 0
    %1261 = vmatpush1.bf16.msra.mxu0 0
    %1262 = vmatprep.subr.bf16.mxu0 0
    %1263 = vmatpush1.bf16.msra.mxu0 0
    %1264 = vmatprep.subr.bf16.mxu0 0
    %1265 = vmatpush1.bf16.msra.mxu0 0
    %1266 = vmatprep.subr.bf16.mxu0 0
    %1267 = vmatpush1.bf16.msra.mxu0 0
    %1268 = vmatprep.subr.bf16.mxu0 0
    %1269 = vmatpush1.bf16.msra.mxu0 0
    %1270 = vmatprep.mubr.bf16.mxu0 0
    %1271 = vmatmul.mubr.bf16.gmra.mrb[0].mxu0 %v1228
    %v1272 = vpop.f32.mrb[0].mxu0
    %v1273 = vadd.f32 %v1203, %v1272
    %v1274 = vpop.f32.mrb[0].mxu0
    %v1275 = vadd.f32 %v1205, %v1274
    %v1276 = vpop.f32.mrb[0].mxu0
    %v1277 = vadd.f32 %v1207, %v1276
    %v1278 = vpop.f32.mrb[0].mxu0
    %v1279 = vadd.f32 %v1209, %v1278
    %1280 = vmatprep.mubr.bf16.mxu0 0
    %1281 = vmatmul.mubr.bf16.gmra.mrb[0].mxu0 %v1231
    %v1282 = vpop.f32.mrb[0].mxu0
    %v1283 = vadd.f32 %v1213, %v1282
    %v1284 = vpop.f32.mrb[0].mxu0
    %v1285 = vadd.f32 %v1215, %v1284
    %v1286 = vpop.f32.mrb[0].mxu0
    %v1287 = vpop.f32.mrb[0].mxu0
    %1288 = vdwg.mxu0
    %1289 = vst [vmem:[#allocation2 + $0x8] sm:$0xff] %v1273
    %1290 = vst.msk [vmem:[#allocation2 + $0x10] sm:$0xff] %vm118, %v1275
    %1291 = vst [vmem:[#allocation2 + $0x28] sm:$0xff] %v1277
    %1292 = vst.msk [vmem:[#allocation2 + $0x30] sm:$0xff] %vm118, %v1279
    %1293 = vst [vmem:[#allocation2 + $0x48] sm:$0x3] %v1283
    %1294 = vst.msk [vmem:[#allocation2 + $0x50] sm:$0x3] %vm464, %v1285
    %v1295 = vld [vmem:[#allocation2] sm:$0x3]
    %v1296 = vld [vmem:[#allocation2 + $0x8] sm:$0x3]
    %v1297 = vld [vmem:[#allocation2 + $0x10] sm:$0x3]
    %v1298 = vld [vmem:[%s7] sm:$0x3]
    %v1300 = vlaneseq
    %v1301 = vshrl.u32 %v1300, 7
    %v1302 = vsub.s32 0, %v1301
    %v1303 = vrot.slane %v1298, %v1302
    %v1304 = vlaneseq
    %v1305 = vshrl.u32 %v1304, 7
    %v1306 = vsub.s32 1, %v1305
    %v1307 = vrot.slane %v1298, %v1306
    %1308 = vrot.lane.b32.xlu0 %v1303, 115
    %v1309 = vpop.permute.xlu0 %1308
    %1310 = vrot.lane.b32.xlu0 %v1307, 115
    %v1311 = vpop.permute.xlu0 %1310
    %v1312 = vsel %vm483, %v1309, %v1311
    %v1316 = vmul.f32 %v1295, %v1309
    %v1317 = vmul.f32 %v1296, %v1312
    %v1318 = vmul.f32 %v1297, %v1311
    %v1319 = vadd.f32 %v1316, 0.0
    %v1320 = vadd.f32 %v1317, 0.0
    %v1321 = vadd.f32 %v1318, 0.0
    %v1322 = vld [vmem:[#allocation2] sm:$0xc]
    %v1323 = vld [vmem:[#allocation2 + $0x8] sm:$0xc]
    %v1324 = vld [vmem:[#allocation2 + $0x10] sm:$0xc]
    %v1325 = vld [vmem:[%s497] sm:$0x3]
    %v1327 = vlaneseq
    %v1328 = vshrl.u32 %v1327, 7
    %v1329 = vsub.s32 0, %v1328
    %v1330 = vrot.slane %v1325, %v1329
    %v1331 = vlaneseq
    %v1332 = vshrl.u32 %v1331, 7
    %v1333 = vsub.s32 1, %v1332
    %v1334 = vrot.slane %v1325, %v1333
    %1335 = vrot.lane.b32.xlu0 %v1330, 116
    %v1336 = vpop.permute.xlu0 %1335
    %1337 = vrot.lane.b32.xlu0 %v1334, 116
    %v1338 = vpop.permute.xlu0 %1337
    %v1339 = vsel %vm512, %v1336, %v1338
    %v1343 = vmul.f32 %v1322, %v1336
    %v1344 = vmul.f32 %v1323, %v1339
    %v1345 = vmul.f32 %v1324, %v1338
    %v1349 = vrot.slane %v1343, 2
    %v1350 = vrot.slane %v1344, 2
    %v1351 = vrot.slane %v1345, 2
    %1352 = vrot.lane.b32.xlu0 %v1349, 127
    %v1353 = vpop.permute.xlu0 %1352
    %1354 = vrot.lane.b32.xlu0 %v1350, 127
    %v1355 = vpop.permute.xlu0 %1354
    %1356 = vrot.lane.b32.xlu0 %v1351, 127
    %v1357 = vpop.permute.xlu0 %1356
    %v1358 = vsel %vm532, %v1353, %v1355
    %v1359 = vsel %vm532, %v1355, %v1357
    %v1363 = vadd.f32 %v1319, %v1358
    %v1364 = vadd.f32 %v1320, %v1359
    %v1365 = vadd.f32 %v1321, %v1357
    %v1366 = vld [vmem:[#allocation2] sm:$0x30]
    %v1367 = vld [vmem:[#allocation2 + $0x8] sm:$0x30]
    %v1368 = vld [vmem:[#allocation2 + $0x10] sm:$0x30]
    %v1369 = vld [vmem:[%s544] sm:$0x3]
    %v1371 = vlaneseq
    %v1372 = vshrl.u32 %v1371, 7
    %v1373 = vsub.s32 0, %v1372
    %v1374 = vrot.slane %v1369, %v1373
    %v1375 = vlaneseq
    %v1376 = vshrl.u32 %v1375, 7
    %v1377 = vsub.s32 1, %v1376
    %v1378 = vrot.slane %v1369, %v1377
    %1379 = vrot.lane.b32.xlu0 %v1374, 117
    %v1380 = vpop.permute.xlu0 %1379
    %1381 = vrot.lane.b32.xlu0 %v1378, 117
    %v1382 = vpop.permute.xlu0 %1381
    %v1383 = vsel %vm559, %v1380, %v1382
    %v1387 = vmul.f32 %v1366, %v1380
    %v1388 = vmul.f32 %v1367, %v1383
    %v1389 = vmul.f32 %v1368, %v1382
    %v1393 = vrot.slane %v1387, 4
    %v1394 = vrot.slane %v1388, 4
    %v1395 = vrot.slane %v1389, 4
    %1396 = vrot.lane.b32.xlu0 %v1393, 126
    %v1397 = vpop.permute.xlu0 %1396
    %1398 = vrot.lane.b32.xlu0 %v1394, 126
    %v1399 = vpop.permute.xlu0 %1398
    %1400 = vrot.lane.b32.xlu0 %v1395, 126
    %v1401 = vpop.permute.xlu0 %1400
    %v1402 = vsel %vm579, %v1397, %v1399
    %v1403 = vsel %vm579, %v1399, %v1401
    %v1407 = vadd.f32 %v1363, %v1402
    %v1408 = vadd.f32 %v1364, %v1403
    %v1409 = vadd.f32 %v1365, %v1401
    %v1410 = vld [vmem:[#allocation2] sm:$0xc0]
    %v1411 = vld [vmem:[#allocation2 + $0x8] sm:$0xc0]
    %v1412 = vld [vmem:[#allocation2 + $0x10] sm:$0xc0]
    %v1413 = vld [vmem:[%s591] sm:$0x3]
    %v1415 = vlaneseq
    %v1416 = vshrl.u32 %v1415, 7
    %v1417 = vsub.s32 0, %v1416
    %v1418 = vrot.slane %v1413, %v1417
    %v1419 = vlaneseq
    %v1420 = vshrl.u32 %v1419, 7
    %v1421 = vsub.s32 1, %v1420
    %v1422 = vrot.slane %v1413, %v1421
    %1423 = vrot.lane.b32.xlu0 %v1418, 127
    %v1424 = vpop.permute.xlu0 %1423
    %1425 = vrot.lane.b32.xlu0 %v1422, 127
    %v1426 = vpop.permute.xlu0 %1425
    %v1427 = vsel %vm532, %v1424, %v1426
    %v1431 = vmul.f32 %v1410, %v1424
    %v1432 = vmul.f32 %v1411, %v1427
    %v1433 = vmul.f32 %v1412, %v1426
    %v1437 = vrot.slane %v1431, 6
    %v1438 = vrot.slane %v1432, 6
    %v1439 = vrot.slane %v1433, 6
    %1440 = vrot.lane.b32.xlu0 %v1437, 116
    %v1441 = vpop.permute.xlu0 %1440
    %1442 = vrot.lane.b32.xlu0 %v1438, 116
    %v1443 = vpop.permute.xlu0 %1442
    %1444 = vrot.lane.b32.xlu0 %v1439, 116
    %v1445 = vpop.permute.xlu0 %1444
    %v1446 = vsel %vm512, %v1441, %v1443
    %v1447 = vsel %vm512, %v1443, %v1445
    %v1451 = vadd.f32 %v1407, %v1446
    %v1452 = vadd.f32 %v1408, %v1447
    %v1453 = vadd.f32 %v1409, %v1445
    %v1454 = vld [vmem:[#allocation2 + $0x28] sm:$0x3]
    %v1455 = vld [vmem:[#allocation2 + $0x30] sm:$0x3]
    %v1456 = vld [vmem:[%s635] sm:$0x3]
    %v1458 = vlaneseq
    %v1459 = vshrl.u32 %v1458, 7
    %v1460 = vsub.s32 0, %v1459
    %v1461 = vrot.slane %v1456, %v1460
    %v1462 = vlaneseq
    %v1463 = vshrl.u32 %v1462, 7
    %v1464 = vsub.s32 1, %v1463
    %v1465 = vrot.slane %v1456, %v1464
    %v1468 = vmul.f32 %v1454, %v1461
    %v1469 = vmul.f32 %v1455, %v1465
    %1472 = vrot.lane.b32.xlu0 %v1468, 115
    %v1473 = vpop.permute.xlu0 %1472
    %1474 = vrot.lane.b32.xlu0 %v1469, 115
    %v1475 = vpop.permute.xlu0 %1474
    %v1476 = vsel %vm483, %v1473, %v1475
    %v1480 = vadd.f32 %v1451, %v1473
    %v1481 = vadd.f32 %v1452, %v1476
    %v1482 = vadd.f32 %v1453, %v1475
    %v1483 = vld [vmem:[#allocation2 + $0x28] sm:$0xc]
    %v1484 = vld [vmem:[#allocation2 + $0x30] sm:$0xc]
    %v1485 = vld [vmem:[#allocation2 + $0x38] sm:$0xc]
    %v1486 = vld [vmem:[%s666] sm:$0x3]
    %v1488 = vlaneseq
    %v1489 = vshrl.u32 %v1488, 7
    %v1490 = vsub.s32 0, %v1489
    %v1491 = vrot.slane %v1486, %v1490
    %v1492 = vlaneseq
    %v1493 = vshrl.u32 %v1492, 7
    %v1494 = vsub.s32 1, %v1493
    %v1495 = vrot.slane %v1486, %v1494
    %1496 = vrot.lane.b32.xlu0 %v1491, 1
    %v1497 = vpop.permute.xlu0 %1496
    %1498 = vrot.lane.b32.xlu0 %v1495, 1
    %v1499 = vpop.permute.xlu0 %1498
    %v1500 = vsel %vm681, %v1497, %v1499
    %v1504 = vmul.f32 %v1483, %v1497
    %v1505 = vmul.f32 %v1484, %v1500
    %v1506 = vmul.f32 %v1485, %v1499
    %v1510 = vrot.slane %v1504, 2
    %v1511 = vrot.slane %v1505, 2
    %v1512 = vrot.slane %v1506, 2
    %1513 = vrot.lane.b32.xlu0 %v1510, 114
    %v1514 = vpop.permute.xlu0 %1513
    %1515 = vrot.lane.b32.xlu0 %v1511, 114
    %v1516 = vpop.permute.xlu0 %1515
    %1517 = vrot.lane.b32.xlu0 %v1512, 114
    %v1518 = vpop.permute.xlu0 %1517
    %v1519 = vsel %vm701, %v1514, %v1516
    %v1520 = vsel %vm701, %v1516, %v1518
    %v1524 = vadd.f32 %v1480, %v1514
    %v1525 = vadd.f32 %v1481, %v1519
    %v1526 = vadd.f32 %v1482, %v1520
    %v1527 = vld [vmem:[#allocation2 + $0x28] sm:$0x30]
    %v1528 = vld [vmem:[#allocation2 + $0x30] sm:$0x30]
    %v1529 = vld [vmem:[#allocation2 + $0x38] sm:$0x30]
    %v1530 = vld [vmem:[%s713] sm:$0x3]
    %v1532 = vlaneseq
    %v1533 = vshrl.u32 %v1532, 7
    %v1534 = vsub.s32 0, %v1533
    %v1535 = vrot.slane %v1530, %v1534
    %v1536 = vlaneseq
    %v1537 = vshrl.u32 %v1536, 7
    %v1538 = vsub.s32 1, %v1537
    %v1539 = vrot.slane %v1530, %v1538
    %1540 = vrot.lane.b32.xlu0 %v1535, 11
    %v1541 = vpop.permute.xlu0 %1540
    %1542 = vrot.lane.b32.xlu0 %v1539, 11
    %v1543 = vpop.permute.xlu0 %1542
    %v1544 = vsel %vm728, %v1541, %v1543
    %v1548 = vmul.f32 %v1527, %v1541
    %v1549 = vmul.f32 %v1528, %v1544
    %v1550 = vmul.f32 %v1529, %v1543
    %v1554 = vrot.slane %v1548, 4
    %v1555 = vrot.slane %v1549, 4
    %v1556 = vrot.slane %v1550, 4
    %1557 = vrot.lane.b32.xlu0 %v1554, 104
    %v1558 = vpop.permute.xlu0 %1557
    %1559 = vrot.lane.b32.xlu0 %v1555, 104
    %v1560 = vpop.permute.xlu0 %1559
    %1561 = vrot.lane.b32.xlu0 %v1556, 104
    %v1562 = vpop.permute.xlu0 %1561
    %v1563 = vsel %vm748, %v1558, %v1560
    %v1564 = vsel %vm748, %v1560, %v1562
    %v1568 = vadd.f32 %v1524, %v1558
    %v1569 = vadd.f32 %v1525, %v1563
    %v1570 = vadd.f32 %v1526, %v1564
    %v1571 = vld [vmem:[#allocation2 + $0x28] sm:$0xc0]
    %v1572 = vld [vmem:[#allocation2 + $0x30] sm:$0xc0]
    %v1573 = vld [vmem:[#allocation2 + $0x38] sm:$0xc0]
    %v1574 = vld [vmem:[%s760] sm:$0x3]
    %v1576 = vlaneseq
    %v1577 = vshrl.u32 %v1576, 7
    %v1578 = vsub.s32 0, %v1577
    %v1579 = vrot.slane %v1574, %v1578
    %v1580 = vlaneseq
    %v1581 = vshrl.u32 %v1580, 7
    %v1582 = vsub.s32 1, %v1581
    %v1583 = vrot.slane %v1574, %v1582
    %1584 = vrot.lane.b32.xlu0 %v1579, 12
    %v1585 = vpop.permute.xlu0 %1584
    %1586 = vrot.lane.b32.xlu0 %v1583, 12
    %v1587 = vpop.permute.xlu0 %1586
    %v1588 = vsel %vm775, %v1585, %v1587
    %v1592 = vmul.f32 %v1571, %v1585
    %v1593 = vmul.f32 %v1572, %v1588
    %v1594 = vmul.f32 %v1573, %v1587
    %v1598 = vrot.slane %v1592, 6
    %v1599 = vrot.slane %v1593, 6
    %v1600 = vrot.slane %v1594, 6
    %1601 = vrot.lane.b32.xlu0 %v1598, 103
    %v1602 = vpop.permute.xlu0 %1601
    %1603 = vrot.lane.b32.xlu0 %v1599, 103
    %v1604 = vpop.permute.xlu0 %1603
    %1605 = vrot.lane.b32.xlu0 %v1600, 103
    %v1606 = vpop.permute.xlu0 %1605
    %v1607 = vsel %vm795, %v1602, %v1604
    %v1608 = vsel %vm795, %v1604, %v1606
    %v1612 = vadd.f32 %v1568, %v1602
    %v1613 = vadd.f32 %v1569, %v1607
    %v1614 = vadd.f32 %v1570, %v1608
    %v1615 = vld [vmem:[#allocation2 + $0x48] sm:$0x3]
    %v1616 = vld [vmem:[#allocation2 + $0x50] sm:$0x3]
    %v1617 = vld [vmem:[#allocation2 + $0x58] sm:$0x3]
    %v1618 = vld [vmem:[%s807] sm:$0x3]
    %v1620 = vlaneseq
    %v1621 = vshrl.u32 %v1620, 7
    %v1622 = vsub.s32 0, %v1621
    %v1623 = vrot.slane %v1618, %v1622
    %v1624 = vlaneseq
    %v1625 = vshrl.u32 %v1624, 7
    %v1626 = vsub.s32 1, %v1625
    %v1627 = vrot.slane %v1618, %v1626
    %1628 = vrot.lane.b32.xlu0 %v1623, 13
    %v1629 = vpop.permute.xlu0 %1628
    %1630 = vrot.lane.b32.xlu0 %v1627, 13
    %v1631 = vpop.permute.xlu0 %1630
    %v1632 = vsel %vm822, %v1629, %v1631
    %v1636 = vmul.f32 %v1615, %v1629
    %v1637 = vmul.f32 %v1616, %v1632
    %v1638 = vmul.f32 %v1617, %v1631
    %1642 = vrot.lane.b32.xlu0 %v1636, 102
    %v1643 = vpop.permute.xlu0 %1642
    %1644 = vrot.lane.b32.xlu0 %v1637, 102
    %v1645 = vpop.permute.xlu0 %1644
    %1646 = vrot.lane.b32.xlu0 %v1638, 102
    %v1647 = vpop.permute.xlu0 %1646
    %v1648 = vsel %vm839, %v1643, %v1645
    %v1649 = vsel %vm839, %v1645, %v1647
    %v1653 = vadd.f32 %v1612, %v1643
    %v1654 = vadd.f32 %v1613, %v1648
    %v1655 = vadd.f32 %v1614, %v1649
    %v1656 = vmax.f32 %v1653, 0.0
    %v1657 = vmax.f32 %v1654, 0.0
    %v1658 = vmax.f32 %v1655, 0.0
    %v1662 = vcombine.low %v1656, %v1657
    %v1664 = vunpack.c.l.s4 1983009808
    %v1665 = vunpack.c.0.s8 %v1664
    %v1666 = vlaneseq
    %v1667 = vshrl.u32 %v1666, 7
    %v1668 = vsub.s32 %v1665, %v1667
    %v1669 = vrot.slane %v1662, %v1668
    %v1671 = vunpack.c.l.s4 1983009808
    %v1672 = vunpack.c.0.s8 %v1671
    %v1673 = vlaneseq
    %v1674 = vshrl.u32 %v1673, 7
    %v1675 = vsub.s32 %v1672, %v1674
    %v1676 = vrot.slane %v1658, %v1675
    %v1677 = vcombine.low %v1669, %v1676
    %1678 = vrot.lane.b32.xlu0 %v1677, 13
    %v1679 = vpop.permute.xlu0 %1678
    %v1680 = vrot.slane %v1679, 2
    %v1681 = vsel %vm822, %v1679, %v1680
    %s1683 = scalar_lea.vmem [#allocation3], 4
    %1684 = vst [vmem:[%s1683] sm:$0xf] %v1681
    // Predicated region
    $region34: #{tpu_custom_call.1} parent=1 // pred_check
      _
    $region35: #{tpu_custom_call.1} parent=1 // pred_check_branch
      %1686 = sbr.rel (0) target = $region37
    $region36: #{tpu_custom_call.1} parent=1 // pred_region
      %s1688 = ssub.s32 128, 128
      %1689 = vsyncadd [#allocation4], %s1688
      %s1690 = sshll.u32 [#allocation3], 4
      %s1691 = int_to_ptr.vmem [resolvable:$true] %s1690
      %1696 = dma.vmem_to_hbm [thread:$0]  %s1691, 128, %s8, [#allocation4], 64, 64, 4
    $region37: #{tpu_custom_call.1} parent=1 // pred_fallthru
      _
    // Predicated region
    $region38: #{tpu_custom_call.1} parent=1 // pred_check
      _
    $region39: #{tpu_custom_call.1} parent=1 // pred_check_branch
      %1698 = sbr.rel (0) target = $region41
    $region40: #{tpu_custom_call.1} parent=1 // pred_region
      %1699 = dma.done [#allocation4], 128
    $region41: #{tpu_custom_call.1} parent=1 // pred_fallthru
      _
    %1700 = vsyncpa [#allocation4], 1

</llo_original>
